<compile_context>
chip_gen: v7x
topology: tpu7x:2x2x1
jax: 0.10.0
libtpu: 0.0.40
codegen_flags: <defaults>
</compile_context>

<pallas_src>
import functools
import threading

import numpy as np

import jax
import jax.numpy as jnp
from jax import lax
from jax.experimental import pallas as pl
from jax.experimental.pallas import tpu as pltpu


# ----------------------------------------------------------------------------
# Pure-JAX reference (mirrors the PyTorch dwt_init) -- verification + probes.
# ----------------------------------------------------------------------------
def dwt_ref(x):
    x01 = x[:, :, 0::2, :] / 2
    x02 = x[:, :, 1::2, :] / 2
    x1 = x01[:, :, :, 0::2]
    x2 = x02[:, :, :, 0::2]
    x3 = x01[:, :, :, 1::2]
    x4 = x02[:, :, :, 1::2]
    return jnp.concatenate(
        (
            x1 + x2 + x3 + x4,
            -x1 - x2 + x3 + x4,
            -x1 + x2 - x3 + x4,
            x1 - x2 - x3 + x4,
        ),
        axis=0,
    )


# ----------------------------------------------------------------------------
# Candidate in-kernel even/odd *lane* (column) deinterleave implementations.
# Each takes (rows, W) and returns (even_cols, odd_cols), each (rows, W//2).
# Ordered cheapest lowering first (perf review): static stride-2 slice lowers
# to lane shuffles; take_along_axis variants can lower to dynamic gathers.
# ----------------------------------------------------------------------------
def _deint_strided_slice(v):
    return v[:, 0::2], v[:, 1::2]


def _deint_take_along(v):
    rows, w = v.shape
    wh = w // 2
    base = lax.broadcasted_iota(jnp.int32, (rows, wh), 1) * 2
    mode = lax.GatherScatterMode.PROMISE_IN_BOUNDS
    return (jnp.take_along_axis(v, base, axis=1, mode=mode),
            jnp.take_along_axis(v, base + 1, axis=1, mode=mode))


def _deint_take_along_default(v):
    rows, w = v.shape
    wh = w // 2
    base = lax.broadcasted_iota(jnp.int32, (rows, wh), 1) * 2
    return (jnp.take_along_axis(v, base, axis=1),
            jnp.take_along_axis(v, base + 1, axis=1))


def _deint_take(v):
    w = v.shape[1]
    idx = jnp.arange(0, w, 2, dtype=jnp.int32)
    return jnp.take(v, idx, axis=1), jnp.take(v, idx + 1, axis=1)


_DEINT_IMPLS = (
    _deint_strided_slice,       # cheapest: static lane shuffles
    _deint_take_along,          # gather, PROMISE_IN_BOUNDS
    _deint_take_along_default,
    _deint_take,
)


# ----------------------------------------------------------------------------
# Tiling helpers.
# ----------------------------------------------------------------------------
def _sublane(dtype):
    # Sublane packing: 8 rows for 4-byte, 16 for 2-byte, 32 for 1-byte dtypes.
    return 8 * max(1, 4 // jnp.dtype(dtype).itemsize)


def _pick_row_tile(hh, row_bytes, sublane, target_bytes=4 * 1024 * 1024):
    """Rows per grid step: multiple of `sublane`, input tile <= target_bytes."""
    max_rows = max(sublane,
                   (target_bytes // max(1, row_bytes)) // sublane * sublane)
    if hh <= max_rows:
        return hh                       # single row-block (block == full dim is legal)
    best = None
    for t in range(sublane, max_rows + 1, sublane):
        if hh % t == 0:
            best = t                    # largest exact divisor <= budget
    if best is not None:
        return best
    return max_rows                     # cdiv grid; padded last block is harmless


def _row_grid(nc, hh, w, itemsize, sublane):
    tile_hh = _pick_row_tile(hh, 2 * w * itemsize, sublane)
    # v7x megacore: make sure there is >1 grid step to shard across the 2 TCs.
    if nc * pl.cdiv(hh, tile_hh) < 2 and hh >= 2 * sublane:
        tile_hh = max(sublane, (hh // 2) // sublane * sublane)
    return tile_hh, (nc, pl.cdiv(hh, tile_hh))


_VMEM_LIMIT = 32 * 1024 * 1024


# ----------------------------------------------------------------------------
# Fused kernel (primary): single HBM pass; row pair packed along lanes.
#   x_ref: (tile_hh, 2*W)   lanes [0, W) = even input row, [W, 2W) = odd row
#   o_ref: (4, tile_hh, Wh) subbands [LL, HL, LH, HH]
# ----------------------------------------------------------------------------
def _dwt_fused_kernel(deint, x_ref, o_ref):
    w2 = x_ref.shape[1]
    w = w2 // 2
    ve = x_ref[:, :w]                 # even rows
    vo = x_ref[:, w:]                 # odd rows
    rs = (ve + vo) * 0.5              # (x[2h] + x[2h+1]) / 2
    rd = (vo - ve) * 0.5              # (x[2h+1] - x[2h]) / 2
    a, b = deint(rs)                  # a = x1+x2, b = x3+x4
    c, d = deint(rd)                  # c = x2-x1, d = x4-x3
    o_ref[0] = a + b                  # LL
    o_ref[1] = b - a                  # HL
    o_ref[2] = c + d                  # LH
    o_ref[3] = d - c                  # HH


def _dwt_pallas_fused(x, deint):
    n, ch, h, w = x.shape
    hh, wh = h // 2, w // 2
    nc = n * ch
    xv = x.reshape(nc, hh, 2 * w)     # free contiguous reshape only
    tile_hh, grid = _row_grid(nc, hh, w, x.dtype.itemsize, _sublane(x.dtype))

    out = pl.pallas_call(
        functools.partial(_dwt_fused_kernel, deint),
        out_shape=jax.ShapeDtypeStruct((4, nc, hh, wh), x.dtype),
        grid_spec=pltpu.PrefetchScalarGridSpec(
            num_scalar_prefetch=0,
            grid=grid,
            in_specs=[
                pl.BlockSpec((pl.Squeezed(), tile_hh, 2 * w),
                             lambda i, r: (i, r, 0)),
            ],
            out_specs=pl.BlockSpec((4, pl.Squeezed(), tile_hh, wh),
                                   lambda i, r: (0, i, r, 0)),
        ),
        compiler_params=pltpu.CompilerParams(
            dimension_semantics=("parallel", "parallel"),
            vmem_limit_bytes=_VMEM_LIMIT,
        ),
    )(xv)
    # (4, N*C, Hh, Wh) -> (4N, C, Hh, Wh): free leading-dim reshape, matches
    # torch.cat((LL, HL, LH, HH), dim=0).
    return out.reshape(4 * n, ch, hh, wh)


# ----------------------------------------------------------------------------
# Fused MXU variant: column butterfly on the (otherwise idle) MXU via an exact
# +/-1 matrix, used only if no lane deinterleave lowers.  Still 1R + 1W.
#   [LL | HL] = rs @ M,  [LH | HH] = rd @ M,   M: (W, 2*Wh)
# ----------------------------------------------------------------------------
@functools.lru_cache(maxsize=16)
def _butterfly_matrix_np(w):
    wh = w // 2
    m = np.zeros((w, 2 * wh), dtype=np.float32)
    j = np.arange(wh)
    m[2 * j, j] = 1.0           # LL:  rs_even + rs_odd
    m[2 * j + 1, j] = 1.0
    m[2 * j, wh + j] = -1.0     # HL: -rs_even + rs_odd
    m[2 * j + 1, wh + j] = 1.0
    return m


def _dwt_fused_mxu_kernel(x_ref, m_ref, o_ref):
    w2 = x_ref.shape[1]
    w = w2 // 2
    wh = w // 2
    ve = x_ref[:, :w]
    vo = x_ref[:, w:]
    rs = (ve + vo) * 0.5
    rd = (vo - ve) * 0.5
    m = m_ref[...]
    llhl = jnp.dot(rs, m, preferred_element_type=jnp.float32)
    lhhh = jnp.dot(rd, m, preferred_element_type=jnp.float32)
    o_ref[0] = llhl[:, :wh].astype(o_ref.dtype)
    o_ref[1] = llhl[:, wh:].astype(o_ref.dtype)
    o_ref[2] = lhhh[:, :wh].astype(o_ref.dtype)
    o_ref[3] = lhhh[:, wh:].astype(o_ref.dtype)


def _dwt_pallas_fused_mxu(x):
    n, ch, h, w = x.shape
    hh, wh = h // 2, w // 2
    nc = n * ch
    xv = x.reshape(nc, hh, 2 * w)
    m = jnp.asarray(_butterfly_matrix_np(w), dtype=x.dtype)  # +/-1 exact in any fp dtype
    tile_hh, grid = _row_grid(nc, hh, w, x.dtype.itemsize, _sublane(x.dtype))

    out = pl.pallas_call(
        _dwt_fused_mxu_kernel,
        out_shape=jax.ShapeDtypeStruct((4, nc, hh, wh), x.dtype),
        grid_spec=pltpu.PrefetchScalarGridSpec(
            num_scalar_prefetch=0,
            grid=grid,
            in_specs=[
                pl.BlockSpec((pl.Squeezed(), tile_hh, 2 * w),
                             lambda i, r: (i, r, 0)),
                pl.BlockSpec((w, 2 * wh), lambda i, r: (0, 0)),  # resident constant
            ],
            out_specs=pl.BlockSpec((4, pl.Squeezed(), tile_hh, wh),
                                   lambda i, r: (0, i, r, 0)),
        ),
        compiler_params=pltpu.CompilerParams(
            dimension_semantics=("parallel", "parallel"),
            vmem_limit_bytes=_VMEM_LIMIT,
        ),
    )(xv, m)
    return out.reshape(4 * n, ch, hh, wh)


# ----------------------------------------------------------------------------
# Last-resort fallback: one XLA shuffle pass pre-splits the column parity
# (2R + 2W total), kernel is a pure butterfly with bulletproof indexing.
# ----------------------------------------------------------------------------
def _dwt_presplit_kernel(x_ref, o_ref):
    wh = x_ref.shape[2] // 2
    x1 = x_ref[0, :, :wh] * 0.5   # even row, even col
    x2 = x_ref[0, :, wh:] * 0.5   # odd row,  even col
    x3 = x_ref[1, :, :wh] * 0.5   # even row, odd col
    x4 = x_ref[1, :, wh:] * 0.5   # odd row,  odd col
    a = x1 + x2
    b = x3 + x4
    c = x2 - x1
    d = x4 - x3
    o_ref[0] = a + b
    o_ref[1] = b - a
    o_ref[2] = c + d
    o_ref[3] = d - c


def _dwt_pallas_presplit(x):
    n, ch, h, w = x.shape
    hh, wh = h // 2, w // 2
    nc = n * ch
    xs = x.reshape(n, ch, hh, 2, wh, 2)
    xs = jnp.transpose(xs, (5, 0, 1, 2, 3, 4))   # (col_parity, N, C, Hh, row_parity, Wh)
    xs = xs.reshape(2, nc, hh, 2 * wh)           # minor packs [even rows | odd rows]
    tile_hh, grid = _row_grid(nc, hh, w, x.dtype.itemsize, _sublane(x.dtype))

    out = pl.pallas_call(
        _dwt_presplit_kernel,
        out_shape=jax.ShapeDtypeStruct((4, nc, hh, wh), x.dtype),
        grid_spec=pltpu.PrefetchScalarGridSpec(
            num_scalar_prefetch=0,
            grid=grid,
            in_specs=[
                pl.BlockSpec((2, pl.Squeezed(), tile_hh, 2 * wh),
                             lambda i, r: (0, i, r, 0)),
            ],
            out_specs=pl.BlockSpec((4, pl.Squeezed(), tile_hh, wh),
                                   lambda i, r: (0, i, r, 0)),
        ),
        compiler_params=pltpu.CompilerParams(
            dimension_semantics=("parallel", "parallel"),
            vmem_limit_bytes=_VMEM_LIMIT,
        ),
    )(xs)
    return out.reshape(4 * n, ch, hh, wh)


# ----------------------------------------------------------------------------
# Per-dtype capability probe: pick implementations that compile on this Mosaic
# version and match the reference, separately for narrow (W <= 128, single
# vreg of lanes) and wide W.  Cached per dtype, thread-safe.
# ----------------------------------------------------------------------------
_NARROW_SHAPE = (1, 1, 16, 16)
_WIDE_SHAPE = (1, 1, 16, 256)

_CACHE = {}
_CACHE_LOCK = threading.Lock()


def _probe_input(shape, dtype):
    n, c, h, w = shape
    x = (jnp.arange(n * c * h * w, dtype=jnp.float32).reshape(shape) % 13.0) - 6.0
    return x.astype(dtype)


def _probe(fn, shape, dtype):
    x = _probe_input(shape, dtype)
    want = dwt_ref(x)
    try:
        got = jax.block_until_ready(fn(x))
    except Exception:
        return False
    tol = 1e-5 if jnp.dtype(dtype).itemsize >= 4 else 2e-2
    return got.shape == want.shape and bool(
        jnp.allclose(got.astype(jnp.float32), want.astype(jnp.float32),
                     atol=tol, rtol=tol))


def _resolve(dtype):
    key = jnp.dtype(dtype).name
    with _CACHE_LOCK:
        if key in _CACHE:
            return _CACHE[key]

    narrow = None
    wide = None
    for impl in _DEINT_IMPLS:
        ok_narrow = _probe(lambda v: _dwt_pallas_fused(v, impl), _NARROW_SHAPE, dtype)
        if ok_narrow and narrow is None:
            narrow = ("deint", impl)
        if ok_narrow and wide is None and _probe(
                lambda v: _dwt_pallas_fused(v, impl), _WIDE_SHAPE, dtype):
            wide = ("deint", impl)
        if narrow is not None and wide is not None:
            break
    # Prefer the idle-MXU butterfly (still 1R+1W) over the 2x-traffic presplit.
    if wide is None and _probe(_dwt_pallas_fused_mxu, _WIDE_SHAPE, dtype):
        wide = ("mxu", None)
    if narrow is None:
        narrow = (("mxu", None)
                  if _probe(_dwt_pallas_fused_mxu, _NARROW_SHAPE, dtype)
                  else ("presplit", None))
    if wide is None:
        wide = ("presplit", None)

    with _CACHE_LOCK:
        _CACHE[key] = (narrow, wide)
    return narrow, wide


# ----------------------------------------------------------------------------
# Public forward (matches DWT.forward / dwt_init semantics, NCHW layout).
# ----------------------------------------------------------------------------
def dwt_forward(x):
    assert x.ndim == 4, "expected NCHW input"
    _, _, h, w = x.shape
    assert h % 2 == 0 and w % 2 == 0, "DWT needs even spatial dims"
    narrow, wide = _resolve(x.dtype)
    kind, impl = narrow if w <= 128 else wide
    if kind == "deint":
        return _dwt_pallas_fused(x, impl)
    if kind == "mxu":
        # Keep the VMEM-resident (W, W) butterfly matrix small (few MiB).
        if w * w * jnp.dtype(x.dtype).itemsize <= 8 * 1024 * 1024:
            return _dwt_pallas_fused_mxu(x)
    # Last resort: still correct everywhere, at the cost of one extra XLA pass.
    return _dwt_pallas_presplit(x)


if __name__ == "__main__":
    key = jax.random.PRNGKey(0)
    x = jax.random.normal(key, (2, 4, 16, 16), dtype=jnp.float32)

    y = jax.block_until_ready(dwt_forward(x))
    y_ref = dwt_ref(x)

    assert y.shape == (8, 4, 8, 8), y.shape
    assert y.dtype == x.dtype
    assert jnp.allclose(y, y_ref, atol=1e-5, rtol=1e-5), "mismatch vs reference"

    print("KERNEL_OK")
</pallas_src>

<mosaic_0001>
module attributes {stable_mosaic.version = 11 : i64} {
  func.func @_dwt_fused_kernel(%arg0: i32, %arg1: i32, %arg2: memref<1x8x32xf32, #tpu.memory_space<vmem>>, %arg3: memref<4x1x8x8xf32, #tpu.memory_space<vmem>>) attributes {dimension_semantics = [#tpu.dimension_semantics<parallel>, #tpu.dimension_semantics<parallel>], iteration_bounds = array<i64: 1, 1>, scalar_prefetch = 0 : i64, scratch_operands = 0 : i64, tpu.core_type = #tpu.core_type<tc>, window_params = [{transform_indices = @transform_0, window_bounds = array<i64: 1, 8, 32>}, {transform_indices = @transform_1, window_bounds = array<i64: 4, 1, 8, 8>}]} {
    %c0 = arith.constant 0 : index
    %c0_0 = arith.constant 0 : index
    %c0_1 = arith.constant 0 : index
    %0 = vector.load %arg2[%c0, %c0_0, %c0_1] : memref<1x8x32xf32, #tpu.memory_space<vmem>>, vector<1x8x16xf32>
    %1 = vector.shape_cast %0 : vector<1x8x16xf32> to vector<8x16xf32>
    %c0_2 = arith.constant 0 : index
    %c0_3 = arith.constant 0 : index
    %c16 = arith.constant 16 : index
    %2 = vector.load %arg2[%c0_2, %c0_3, %c16] : memref<1x8x32xf32, #tpu.memory_space<vmem>>, vector<1x8x16xf32>
    %3 = vector.shape_cast %2 : vector<1x8x16xf32> to vector<8x16xf32>
    %4 = arith.addf %1, %3 : vector<8x16xf32>
    %cst = arith.constant 5.000000e-01 : f32
    %5 = vector.broadcast %cst : f32 to vector<8x16xf32>
    %6 = arith.mulf %4, %5 : vector<8x16xf32>
    %7 = arith.subf %3, %1 : vector<8x16xf32>
    %cst_4 = arith.constant 5.000000e-01 : f32
    %8 = vector.broadcast %cst_4 : f32 to vector<8x16xf32>
    %9 = arith.mulf %7, %8 : vector<8x16xf32>
    %10 = tpu.iota {dimensions = array<i32: 1>} : vector<8x8xi32>
    %c2_i32 = arith.constant 2 : i32
    %11 = vector.broadcast %c2_i32 : i32 to vector<8x8xi32>
    %12 = arith.muli %10, %11 : vector<8x8xi32>
    %c0_i32 = arith.constant 0 : i32
    %13 = vector.broadcast %c0_i32 : i32 to vector<8x8xi32>
    %14 = arith.cmpi slt, %12, %13 : vector<8x8xi32>
    %c16_i32 = arith.constant 16 : i32
    %15 = vector.broadcast %c16_i32 : i32 to vector<8x8xi32>
    %16 = arith.addi %12, %15 : vector<8x8xi32>
    %17 = arith.select %14, %16, %12 : vector<8x8xi1>, vector<8x8xi32>
    %18 = vector.shape_cast %17 : vector<8x8xi32> to vector<8x8x1xi32>
    %19 = vector.shape_cast %18 : vector<8x8x1xi32> to vector<8x8xi32>
    %20 = tpu.dynamic_gather %6[%19] in [1] : vector<8x16xf32>, vector<8x8xi32> -> vector<8x8xf32>
    %c1_i32 = arith.constant 1 : i32
    %21 = vector.broadcast %c1_i32 : i32 to vector<8x8xi32>
    %22 = arith.addi %12, %21 : vector<8x8xi32>
    %c0_i32_5 = arith.constant 0 : i32
    %23 = vector.broadcast %c0_i32_5 : i32 to vector<8x8xi32>
    %24 = arith.cmpi slt, %22, %23 : vector<8x8xi32>
    %c16_i32_6 = arith.constant 16 : i32
    %25 = vector.broadcast %c16_i32_6 : i32 to vector<8x8xi32>
    %26 = arith.addi %22, %25 : vector<8x8xi32>
    %27 = arith.select %24, %26, %22 : vector<8x8xi1>, vector<8x8xi32>
    %28 = vector.shape_cast %27 : vector<8x8xi32> to vector<8x8x1xi32>
    %29 = vector.shape_cast %28 : vector<8x8x1xi32> to vector<8x8xi32>
    %30 = tpu.dynamic_gather %6[%29] in [1] : vector<8x16xf32>, vector<8x8xi32> -> vector<8x8xf32>
    %31 = tpu.iota {dimensions = array<i32: 1>} : vector<8x8xi32>
    %c2_i32_7 = arith.constant 2 : i32
    %32 = vector.broadcast %c2_i32_7 : i32 to vector<8x8xi32>
    %33 = arith.muli %31, %32 : vector<8x8xi32>
    %c0_i32_8 = arith.constant 0 : i32
    %34 = vector.broadcast %c0_i32_8 : i32 to vector<8x8xi32>
    %35 = arith.cmpi slt, %33, %34 : vector<8x8xi32>
    %c16_i32_9 = arith.constant 16 : i32
    %36 = vector.broadcast %c16_i32_9 : i32 to vector<8x8xi32>
    %37 = arith.addi %33, %36 : vector<8x8xi32>
    %38 = arith.select %35, %37, %33 : vector<8x8xi1>, vector<8x8xi32>
    %39 = vector.shape_cast %38 : vector<8x8xi32> to vector<8x8x1xi32>
    %40 = vector.shape_cast %39 : vector<8x8x1xi32> to vector<8x8xi32>
    %41 = tpu.dynamic_gather %9[%40] in [1] : vector<8x16xf32>, vector<8x8xi32> -> vector<8x8xf32>
    %c1_i32_10 = arith.constant 1 : i32
    %42 = vector.broadcast %c1_i32_10 : i32 to vector<8x8xi32>
    %43 = arith.addi %33, %42 : vector<8x8xi32>
    %c0_i32_11 = arith.constant 0 : i32
    %44 = vector.broadcast %c0_i32_11 : i32 to vector<8x8xi32>
    %45 = arith.cmpi slt, %43, %44 : vector<8x8xi32>
    %c16_i32_12 = arith.constant 16 : i32
    %46 = vector.broadcast %c16_i32_12 : i32 to vector<8x8xi32>
    %47 = arith.addi %43, %46 : vector<8x8xi32>
    %48 = arith.select %45, %47, %43 : vector<8x8xi1>, vector<8x8xi32>
    %49 = vector.shape_cast %48 : vector<8x8xi32> to vector<8x8x1xi32>
    %50 = vector.shape_cast %49 : vector<8x8x1xi32> to vector<8x8xi32>
    %51 = tpu.dynamic_gather %9[%50] in [1] : vector<8x16xf32>, vector<8x8xi32> -> vector<8x8xf32>
    %52 = arith.addf %20, %30 : vector<8x8xf32>
    %c0_13 = arith.constant 0 : index
    %c0_14 = arith.constant 0 : index
    %c0_15 = arith.constant 0 : index
    %c0_16 = arith.constant 0 : index
    %53 = vector.load %arg3[%c0_13, %c0_14, %c0_15, %c0_16] : memref<4x1x8x8xf32, #tpu.memory_space<vmem>>, vector<1x1x8x8xf32>
    %54 = vector.shape_cast %53 : vector<1x1x8x8xf32> to vector<8x8xf32>
    %55 = vector.shape_cast %52 : vector<8x8xf32> to vector<1x1x8x8xf32>
    tpu.vector_store %arg3[%c0_13, %c0_14, %c0_15, %c0_16], %55 {strides = array<i32>} : memref<4x1x8x8xf32, #tpu.memory_space<vmem>>, vector<1x1x8x8xf32>,
    %56 = arith.subf %30, %20 : vector<8x8xf32>
    %c1 = arith.constant 1 : index
    %c0_17 = arith.constant 0 : index
    %c0_18 = arith.constant 0 : index
    %c0_19 = arith.constant 0 : index
    %57 = vector.load %arg3[%c1, %c0_17, %c0_18, %c0_19] : memref<4x1x8x8xf32, #tpu.memory_space<vmem>>, vector<1x1x8x8xf32>
    %58 = vector.shape_cast %57 : vector<1x1x8x8xf32> to vector<8x8xf32>
    %59 = vector.shape_cast %56 : vector<8x8xf32> to vector<1x1x8x8xf32>
    tpu.vector_store %arg3[%c1, %c0_17, %c0_18, %c0_19], %59 {strides = array<i32>} : memref<4x1x8x8xf32, #tpu.memory_space<vmem>>, vector<1x1x8x8xf32>,
    %60 = arith.addf %41, %51 : vector<8x8xf32>
    %c2 = arith.constant 2 : index
    %c0_20 = arith.constant 0 : index
    %c0_21 = arith.constant 0 : index
    %c0_22 = arith.constant 0 : index
    %61 = vector.load %arg3[%c2, %c0_20, %c0_21, %c0_22] : memref<4x1x8x8xf32, #tpu.memory_space<vmem>>, vector<1x1x8x8xf32>
    %62 = vector.shape_cast %61 : vector<1x1x8x8xf32> to vector<8x8xf32>
    %63 = vector.shape_cast %60 : vector<8x8xf32> to vector<1x1x8x8xf32>
    tpu.vector_store %arg3[%c2, %c0_20, %c0_21, %c0_22], %63 {strides = array<i32>} : memref<4x1x8x8xf32, #tpu.memory_space<vmem>>, vector<1x1x8x8xf32>,
    %64 = arith.subf %51, %41 : vector<8x8xf32>
    %c3 = arith.constant 3 : index
    %c0_23 = arith.constant 0 : index
    %c0_24 = arith.constant 0 : index
    %c0_25 = arith.constant 0 : index
    %65 = vector.load %arg3[%c3, %c0_23, %c0_24, %c0_25] : memref<4x1x8x8xf32, #tpu.memory_space<vmem>>, vector<1x1x8x8xf32>
    %66 = vector.shape_cast %65 : vector<1x1x8x8xf32> to vector<8x8xf32>
    %67 = vector.shape_cast %64 : vector<8x8xf32> to vector<1x1x8x8xf32>
    tpu.vector_store %arg3[%c3, %c0_23, %c0_24, %c0_25], %67 {strides = array<i32>} : memref<4x1x8x8xf32, #tpu.memory_space<vmem>>, vector<1x1x8x8xf32>,
    return
  }
  func.func @transform_0(%arg0: i32, %arg1: i32) -> (i32, i32, i32) {
    %c0_i32 = arith.constant 0 : i32
    %c0_i32_0 = arith.constant 0 : i32
    return %arg0, %arg1, %c0_i32 : i32, i32, i32
  }
  func.func @transform_1(%arg0: i32, %arg1: i32) -> (i32, i32, i32, i32) {
    %c0_i32 = arith.constant 0 : i32
    %c0_i32_0 = arith.constant 0 : i32
    %c0_i32_1 = arith.constant 0 : i32
    return %c0_i32, %arg0, %arg1, %c0_i32_0 : i32, i32, i32, i32
  }
}

module attributes {stable_mosaic.version = 11 : i64} {
  func.func @_dwt_fused_kernel(%arg0: i32, %arg1: i32, %arg2: memref<1x8x32xf32, #tpu.memory_space<vmem>>, %arg3: memref<4x1x8x8xf32, #tpu.memory_space<vmem>>) attributes {dimension_semantics = [#tpu.dimension_semantics<parallel>, #tpu.dimension_semantics<parallel>], iteration_bounds = array<i64: 1, 1>, scalar_prefetch = 0 : i64, scratch_operands = 0 : i64, tpu.core_type = #tpu.core_type<tc>, window_params = [{transform_indices = @transform_0, window_bounds = array<i64: 1, 8, 32>}, {transform_indices = @transform_1, window_bounds = array<i64: 4, 1, 8, 8>}]} {
    %c0 = arith.constant 0 : index
    %c0_0 = arith.constant 0 : index
    %c0_1 = arith.constant 0 : index
    %0 = vector.load %arg2[%c0, %c0_0, %c0_1] : memref<1x8x32xf32, #tpu.memory_space<vmem>>, vector<1x8x16xf32>
    %1 = vector.shape_cast %0 : vector<1x8x16xf32> to vector<8x16xf32>
    %c0_2 = arith.constant 0 : index
    %c0_3 = arith.constant 0 : index
    %c16 = arith.constant 16 : index
    %2 = vector.load %arg2[%c0_2, %c0_3, %c16] : memref<1x8x32xf32, #tpu.memory_space<vmem>>, vector<1x8x16xf32>
    %3 = vector.shape_cast %2 : vector<1x8x16xf32> to vector<8x16xf32>
    %4 = arith.addf %1, %3 : vector<8x16xf32>
    %cst = arith.constant 5.000000e-01 : f32
    %5 = vector.broadcast %cst : f32 to vector<8x16xf32>
    %6 = arith.mulf %4, %5 : vector<8x16xf32>
    %7 = arith.subf %3, %1 : vector<8x16xf32>
    %cst_4 = arith.constant 5.000000e-01 : f32
    %8 = vector.broadcast %cst_4 : f32 to vector<8x16xf32>
    %9 = arith.mulf %7, %8 : vector<8x16xf32>
    %10 = tpu.iota {dimensions = array<i32: 1>} : vector<8x8xi32>
    %c2_i32 = arith.constant 2 : i32
    %11 = vector.broadcast %c2_i32 : i32 to vector<8x8xi32>
    %12 = arith.muli %10, %11 : vector<8x8xi32>
    %c0_i32 = arith.constant 0 : i32
    %13 = vector.broadcast %c0_i32 : i32 to vector<8x8xi32>
    %14 = arith.cmpi slt, %12, %13 : vector<8x8xi32>
    %c16_i32 = arith.constant 16 : i32
    %15 = vector.broadcast %c16_i32 : i32 to vector<8x8xi32>
    %16 = arith.addi %12, %15 : vector<8x8xi32>
    %17 = arith.select %14, %16, %12 : vector<8x8xi1>, vector<8x8xi32>
    %18 = vector.shape_cast %17 : vector<8x8xi32> to vector<8x8x1xi32>
    %19 = vector.shape_cast %18 : vector<8x8x1xi32> to vector<8x8xi32>
    %20 = tpu.dynamic_gather %6[%19] in [1] : vector<8x16xf32>, vector<8x8xi32> -> vector<8x8xf32>
    %c1_i32 = arith.constant 1 : i32
    %21 = vector.broadcast %c1_i32 : i32 to vector<8x8xi32>
    %22 = arith.addi %12, %21 : vector<8x8xi32>
    %c0_i32_5 = arith.constant 0 : i32
    %23 = vector.broadcast %c0_i32_5 : i32 to vector<8x8xi32>
    %24 = arith.cmpi slt, %22, %23 : vector<8x8xi32>
    %c16_i32_6 = arith.constant 16 : i32
    %25 = vector.broadcast %c16_i32_6 : i32 to vector<8x8xi32>
    %26 = arith.addi %22, %25 : vector<8x8xi32>
    %27 = arith.select %24, %26, %22 : vector<8x8xi1>, vector<8x8xi32>
    %28 = vector.shape_cast %27 : vector<8x8xi32> to vector<8x8x1xi32>
    %29 = vector.shape_cast %28 : vector<8x8x1xi32> to vector<8x8xi32>
    %30 = tpu.dynamic_gather %6[%29] in [1] : vector<8x16xf32>, vector<8x8xi32> -> vector<8x8xf32>
    %31 = tpu.iota {dimensions = array<i32: 1>} : vector<8x8xi32>
    %c2_i32_7 = arith.constant 2 : i32
    %32 = vector.broadcast %c2_i32_7 : i32 to vector<8x8xi32>
    %33 = arith.muli %31, %32 : vector<8x8xi32>
    %c0_i32_8 = arith.constant 0 : i32
    %34 = vector.broadcast %c0_i32_8 : i32 to vector<8x8xi32>
    %35 = arith.cmpi slt, %33, %34 : vector<8x8xi32>
    %c16_i32_9 = arith.constant 16 : i32
    %36 = vector.broadcast %c16_i32_9 : i32 to vector<8x8xi32>
    %37 = arith.addi %33, %36 : vector<8x8xi32>
    %38 = arith.select %35, %37, %33 : vector<8x8xi1>, vector<8x8xi32>
    %39 = vector.shape_cast %38 : vector<8x8xi32> to vector<8x8x1xi32>
    %40 = vector.shape_cast %39 : vector<8x8x1xi32> to vector<8x8xi32>
    %41 = tpu.dynamic_gather %9[%40] in [1] : vector<8x16xf32>, vector<8x8xi32> -> vector<8x8xf32>
    %c1_i32_10 = arith.constant 1 : i32
    %42 = vector.broadcast %c1_i32_10 : i32 to vector<8x8xi32>
    %43 = arith.addi %33, %42 : vector<8x8xi32>
    %c0_i32_11 = arith.constant 0 : i32
    %44 = vector.broadcast %c0_i32_11 : i32 to vector<8x8xi32>
    %45 = arith.cmpi slt, %43, %44 : vector<8x8xi32>
    %c16_i32_12 = arith.constant 16 : i32
    %46 = vector.broadcast %c16_i32_12 : i32 to vector<8x8xi32>
    %47 = arith.addi %43, %46 : vector<8x8xi32>
    %48 = arith.select %45, %47, %43 : vector<8x8xi1>, vector<8x8xi32>
    %49 = vector.shape_cast %48 : vector<8x8xi32> to vector<8x8x1xi32>
    %50 = vector.shape_cast %49 : vector<8x8x1xi32> to vector<8x8xi32>
    %51 = tpu.dynamic_gather %9[%50] in [1] : vector<8x16xf32>, vector<8x8xi32> -> vector<8x8xf32>
    %52 = arith.addf %20, %30 : vector<8x8xf32>
    %c0_13 = arith.constant 0 : index
    %c0_14 = arith.constant 0 : index
    %c0_15 = arith.constant 0 : index
    %c0_16 = arith.constant 0 : index
    %53 = vector.load %arg3[%c0_13, %c0_14, %c0_15, %c0_16] : memref<4x1x8x8xf32, #tpu.memory_space<vmem>>, vector<1x1x8x8xf32>
    %54 = vector.shape_cast %53 : vector<1x1x8x8xf32> to vector<8x8xf32>
    %55 = vector.shape_cast %52 : vector<8x8xf32> to vector<1x1x8x8xf32>
    tpu.vector_store %arg3[%c0_13, %c0_14, %c0_15, %c0_16], %55 {strides = array<i32>} : memref<4x1x8x8xf32, #tpu.memory_space<vmem>>, vector<1x1x8x8xf32>,
    %56 = arith.subf %30, %20 : vector<8x8xf32>
    %c1 = arith.constant 1 : index
    %c0_17 = arith.constant 0 : index
    %c0_18 = arith.constant 0 : index
    %c0_19 = arith.constant 0 : index
    %57 = vector.load %arg3[%c1, %c0_17, %c0_18, %c0_19] : memref<4x1x8x8xf32, #tpu.memory_space<vmem>>, vector<1x1x8x8xf32>
    %58 = vector.shape_cast %57 : vector<1x1x8x8xf32> to vector<8x8xf32>
    %59 = vector.shape_cast %56 : vector<8x8xf32> to vector<1x1x8x8xf32>
    tpu.vector_store %arg3[%c1, %c0_17, %c0_18, %c0_19], %59 {strides = array<i32>} : memref<4x1x8x8xf32, #tpu.memory_space<vmem>>, vector<1x1x8x8xf32>,
    %60 = arith.addf %41, %51 : vector<8x8xf32>
    %c2 = arith.constant 2 : index
    %c0_20 = arith.constant 0 : index
    %c0_21 = arith.constant 0 : index
    %c0_22 = arith.constant 0 : index
    %61 = vector.load %arg3[%c2, %c0_20, %c0_21, %c0_22] : memref<4x1x8x8xf32, #tpu.memory_space<vmem>>, vector<1x1x8x8xf32>
    %62 = vector.shape_cast %61 : vector<1x1x8x8xf32> to vector<8x8xf32>
    %63 = vector.shape_cast %60 : vector<8x8xf32> to vector<1x1x8x8xf32>
    tpu.vector_store %arg3[%c2, %c0_20, %c0_21, %c0_22], %63 {strides = array<i32>} : memref<4x1x8x8xf32, #tpu.memory_space<vmem>>, vector<1x1x8x8xf32>,
    %64 = arith.subf %51, %41 : vector<8x8xf32>
    %c3 = arith.constant 3 : index
    %c0_23 = arith.constant 0 : index
    %c0_24 = arith.constant 0 : index
    %c0_25 = arith.constant 0 : index
    %65 = vector.load %arg3[%c3, %c0_23, %c0_24, %c0_25] : memref<4x1x8x8xf32, #tpu.memory_space<vmem>>, vector<1x1x8x8xf32>
    %66 = vector.shape_cast %65 : vector<1x1x8x8xf32> to vector<8x8xf32>
    %67 = vector.shape_cast %64 : vector<8x8xf32> to vector<1x1x8x8xf32>
    tpu.vector_store %arg3[%c3, %c0_23, %c0_24, %c0_25], %67 {strides = array<i32>} : memref<4x1x8x8xf32, #tpu.memory_space<vmem>>, vector<1x1x8x8xf32>,
    return
  }
  func.func @transform_0(%arg0: i32, %arg1: i32) -> (i32, i32, i32) {
    %c0_i32 = arith.constant 0 : i32
    %c0_i32_0 = arith.constant 0 : i32
    return %arg0, %arg1, %c0_i32 : i32, i32, i32
  }
  func.func @transform_1(%arg0: i32, %arg1: i32) -> (i32, i32, i32, i32) {
    %c0_i32 = arith.constant 0 : i32
    %c0_i32_0 = arith.constant 0 : i32
    %c0_i32_1 = arith.constant 0 : i32
    return %c0_i32, %arg0, %arg1, %c0_i32_0 : i32, i32, i32, i32
  }
}

module attributes {stable_mosaic.version = 11 : i64} {
  func.func @_dwt_fused_mxu_kernel(%arg0: i32, %arg1: i32, %arg2: memref<1x8x512xf32, #tpu.memory_space<vmem>>, %arg3: memref<256x256xf32, #tpu.memory_space<vmem>>, %arg4: memref<4x1x8x128xf32, #tpu.memory_space<vmem>>) attributes {dimension_semantics = [#tpu.dimension_semantics<parallel>, #tpu.dimension_semantics<parallel>], iteration_bounds = array<i64: 1, 1>, scalar_prefetch = 0 : i64, scratch_operands = 0 : i64, tpu.core_type = #tpu.core_type<tc>, window_params = [{transform_indices = @transform_0, window_bounds = array<i64: 1, 8, 512>}, {pipeline_mode = #tpu.pipeline_mode<synchronous>, transform_indices = @transform_1, window_bounds = array<i64: 256, 256>}, {transform_indices = @transform_2, window_bounds = array<i64: 4, 1, 8, 128>}]} {
    %c0 = arith.constant 0 : index
    %c0_0 = arith.constant 0 : index
    %c0_1 = arith.constant 0 : index
    %0 = vector.load %arg2[%c0, %c0_0, %c0_1] : memref<1x8x512xf32, #tpu.memory_space<vmem>>, vector<1x8x256xf32>
    %1 = vector.shape_cast %0 : vector<1x8x256xf32> to vector<8x256xf32>
    %c0_2 = arith.constant 0 : index
    %c0_3 = arith.constant 0 : index
    %c256 = arith.constant 256 : index
    %2 = vector.load %arg2[%c0_2, %c0_3, %c256] : memref<1x8x512xf32, #tpu.memory_space<vmem>>, vector<1x8x256xf32>
    %3 = vector.shape_cast %2 : vector<1x8x256xf32> to vector<8x256xf32>
    %4 = arith.addf %1, %3 : vector<8x256xf32>
    %cst = arith.constant 5.000000e-01 : f32
    %5 = vector.broadcast %cst : f32 to vector<8x256xf32>
    %6 = arith.mulf %4, %5 : vector<8x256xf32>
    %7 = arith.subf %3, %1 : vector<8x256xf32>
    %cst_4 = arith.constant 5.000000e-01 : f32
    %8 = vector.broadcast %cst_4 : f32 to vector<8x256xf32>
    %9 = arith.mulf %7, %8 : vector<8x256xf32>
    %c0_5 = arith.constant 0 : index
    %c0_6 = arith.constant 0 : index
    %10 = vector.load %arg3[%c0_5, %c0_6] : memref<256x256xf32, #tpu.memory_space<vmem>>, vector<256x256xf32>
    %cst_7 = arith.constant dense<0.000000e+00> : vector<8x256xf32>
    %11 = tpu.matmul %6, %10, %cst_7 {dimension_numbers = #tpu.dot_dimension_numbers<[1], [0], [0], [1], [0, 0, 1, 1], [], []>} : vector<8x256xf32>, vector<256x256xf32>, vector<8x256xf32> -> vector<8x256xf32>
    %cst_8 = arith.constant dense<0.000000e+00> : vector<8x256xf32>
    %12 = tpu.matmul %9, %10, %cst_8 {dimension_numbers = #tpu.dot_dimension_numbers<[1], [0], [0], [1], [0, 0, 1, 1], [], []>} : vector<8x256xf32>, vector<256x256xf32>, vector<8x256xf32> -> vector<8x256xf32>
    %13 = vector.extract_strided_slice %11 {offsets = [0, 0], sizes = [8, 128], strides = [1, 1]} : vector<8x256xf32> to vector<8x128xf32>
    %c0_9 = arith.constant 0 : index
    %c0_10 = arith.constant 0 : index
    %c0_11 = arith.constant 0 : index
    %c0_12 = arith.constant 0 : index
    %14 = vector.load %arg4[%c0_9, %c0_10, %c0_11, %c0_12] : memref<4x1x8x128xf32, #tpu.memory_space<vmem>>, vector<1x1x8x128xf32>
    %15 = vector.shape_cast %14 : vector<1x1x8x128xf32> to vector<8x128xf32>
    %16 = vector.shape_cast %13 : vector<8x128xf32> to vector<1x1x8x128xf32>
    tpu.vector_store %arg4[%c0_9, %c0_10, %c0_11, %c0_12], %16 {strides = array<i32>} : memref<4x1x8x128xf32, #tpu.memory_space<vmem>>, vector<1x1x8x128xf32>,
    %17 = vector.extract_strided_slice %11 {offsets = [0, 128], sizes = [8, 128], strides = [1, 1]} : vector<8x256xf32> to vector<8x128xf32>
    %c1 = arith.constant 1 : index
    %c0_13 = arith.constant 0 : index
    %c0_14 = arith.constant 0 : index
    %c0_15 = arith.constant 0 : index
    %18 = vector.load %arg4[%c1, %c0_13, %c0_14, %c0_15] : memref<4x1x8x128xf32, #tpu.memory_space<vmem>>, vector<1x1x8x128xf32>
    %19 = vector.shape_cast %18 : vector<1x1x8x128xf32> to vector<8x128xf32>
    %20 = vector.shape_cast %17 : vector<8x128xf32> to vector<1x1x8x128xf32>
    tpu.vector_store %arg4[%c1, %c0_13, %c0_14, %c0_15], %20 {strides = array<i32>} : memref<4x1x8x128xf32, #tpu.memory_space<vmem>>, vector<1x1x8x128xf32>,
    %21 = vector.extract_strided_slice %12 {offsets = [0, 0], sizes = [8, 128], strides = [1, 1]} : vector<8x256xf32> to vector<8x128xf32>
    %c2 = arith.constant 2 : index
    %c0_16 = arith.constant 0 : index
    %c0_17 = arith.constant 0 : index
    %c0_18 = arith.constant 0 : index
    %22 = vector.load %arg4[%c2, %c0_16, %c0_17, %c0_18] : memref<4x1x8x128xf32, #tpu.memory_space<vmem>>, vector<1x1x8x128xf32>
    %23 = vector.shape_cast %22 : vector<1x1x8x128xf32> to vector<8x128xf32>
    %24 = vector.shape_cast %21 : vector<8x128xf32> to vector<1x1x8x128xf32>
    tpu.vector_store %arg4[%c2, %c0_16, %c0_17, %c0_18], %24 {strides = array<i32>} : memref<4x1x8x128xf32, #tpu.memory_space<vmem>>, vector<1x1x8x128xf32>,
    %25 = vector.extract_strided_slice %12 {offsets = [0, 128], sizes = [8, 128], strides = [1, 1]} : vector<8x256xf32> to vector<8x128xf32>
    %c3 = arith.constant 3 : index
    %c0_19 = arith.constant 0 : index
    %c0_20 = arith.constant 0 : index
    %c0_21 = arith.constant 0 : index
    %26 = vector.load %arg4[%c3, %c0_19, %c0_20, %c0_21] : memref<4x1x8x128xf32, #tpu.memory_space<vmem>>, vector<1x1x8x128xf32>
    %27 = vector.shape_cast %26 : vector<1x1x8x128xf32> to vector<8x128xf32>
    %28 = vector.shape_cast %25 : vector<8x128xf32> to vector<1x1x8x128xf32>
    tpu.vector_store %arg4[%c3, %c0_19, %c0_20, %c0_21], %28 {strides = array<i32>} : memref<4x1x8x128xf32, #tpu.memory_space<vmem>>, vector<1x1x8x128xf32>,
    return
  }
  func.func @transform_0(%arg0: i32, %arg1: i32) -> (i32, i32, i32) {
    %c0_i32 = arith.constant 0 : i32
    %c0_i32_0 = arith.constant 0 : i32
    return %arg0, %arg1, %c0_i32 : i32, i32, i32
  }
  func.func @transform_1(%arg0: i32, %arg1: i32) -> (i32, i32) {
    %c0_i32 = arith.constant 0 : i32
    %c0_i32_0 = arith.constant 0 : i32
    %c0_i32_1 = arith.constant 0 : i32
    return %c0_i32, %c0_i32_0 : i32, i32
  }
  func.func @transform_2(%arg0: i32, %arg1: i32) -> (i32, i32, i32, i32) {
    %c0_i32 = arith.constant 0 : i32
    %c0_i32_0 = arith.constant 0 : i32
    %c0_i32_1 = arith.constant 0 : i32
    return %c0_i32, %arg0, %arg1, %c0_i32_0 : i32, i32, i32, i32
  }
}

module attributes {stable_mosaic.version = 11 : i64} {
  func.func @_dwt_fused_mxu_kernel(%arg0: i32, %arg1: i32, %arg2: memref<1x8x32xf32, #tpu.memory_space<vmem>>, %arg3: memref<16x16xf32, #tpu.memory_space<vmem>>, %arg4: memref<4x1x8x8xf32, #tpu.memory_space<vmem>>) attributes {dimension_semantics = [#tpu.dimension_semantics<parallel>, #tpu.dimension_semantics<parallel>], iteration_bounds = array<i64: 1, 1>, scalar_prefetch = 0 : i64, scratch_operands = 0 : i64, tpu.core_type = #tpu.core_type<tc>, window_params = [{transform_indices = @transform_0, window_bounds = array<i64: 1, 8, 32>}, {pipeline_mode = #tpu.pipeline_mode<synchronous>, transform_indices = @transform_1, window_bounds = array<i64: 16, 16>}, {transform_indices = @transform_2, window_bounds = array<i64: 4, 1, 8, 8>}]} {
    %c0 = arith.constant 0 : index
    %c0_0 = arith.constant 0 : index
    %c0_1 = arith.constant 0 : index
    %0 = vector.load %arg2[%c0, %c0_0, %c0_1] : memref<1x8x32xf32, #tpu.memory_space<vmem>>, vector<1x8x16xf32>
    %1 = vector.shape_cast %0 : vector<1x8x16xf32> to vector<8x16xf32>
    %c0_2 = arith.constant 0 : index
    %c0_3 = arith.constant 0 : index
    %c16 = arith.constant 16 : index
    %2 = vector.load %arg2[%c0_2, %c0_3, %c16] : memref<1x8x32xf32, #tpu.memory_space<vmem>>, vector<1x8x16xf32>
    %3 = vector.shape_cast %2 : vector<1x8x16xf32> to vector<8x16xf32>
    %4 = arith.addf %1, %3 : vector<8x16xf32>
    %cst = arith.constant 5.000000e-01 : f32
    %5 = vector.broadcast %cst : f32 to vector<8x16xf32>
    %6 = arith.mulf %4, %5 : vector<8x16xf32>
    %7 = arith.subf %3, %1 : vector<8x16xf32>
    %cst_4 = arith.constant 5.000000e-01 : f32
    %8 = vector.broadcast %cst_4 : f32 to vector<8x16xf32>
    %9 = arith.mulf %7, %8 : vector<8x16xf32>
    %c0_5 = arith.constant 0 : index
    %c0_6 = arith.constant 0 : index
    %10 = vector.load %arg3[%c0_5, %c0_6] : memref<16x16xf32, #tpu.memory_space<vmem>>, vector<16x16xf32>
    %cst_7 = arith.constant dense<0.000000e+00> : vector<8x16xf32>
    %11 = tpu.matmul %6, %10, %cst_7 {dimension_numbers = #tpu.dot_dimension_numbers<[1], [0], [0], [1], [0, 0, 1, 1], [], []>} : vector<8x16xf32>, vector<16x16xf32>, vector<8x16xf32> -> vector<8x16xf32>
    %cst_8 = arith.constant dense<0.000000e+00> : vector<8x16xf32>
    %12 = tpu.matmul %9, %10, %cst_8 {dimension_numbers = #tpu.dot_dimension_numbers<[1], [0], [0], [1], [0, 0, 1, 1], [], []>} : vector<8x16xf32>, vector<16x16xf32>, vector<8x16xf32> -> vector<8x16xf32>
    %13 = vector.extract_strided_slice %11 {offsets = [0, 0], sizes = [8, 8], strides = [1, 1]} : vector<8x16xf32> to vector<8x8xf32>
    %c0_9 = arith.constant 0 : index
    %c0_10 = arith.constant 0 : index
    %c0_11 = arith.constant 0 : index
    %c0_12 = arith.constant 0 : index
    %14 = vector.load %arg4[%c0_9, %c0_10, %c0_11, %c0_12] : memref<4x1x8x8xf32, #tpu.memory_space<vmem>>, vector<1x1x8x8xf32>
    %15 = vector.shape_cast %14 : vector<1x1x8x8xf32> to vector<8x8xf32>
    %16 = vector.shape_cast %13 : vector<8x8xf32> to vector<1x1x8x8xf32>
    tpu.vector_store %arg4[%c0_9, %c0_10, %c0_11, %c0_12], %16 {strides = array<i32>} : memref<4x1x8x8xf32, #tpu.memory_space<vmem>>, vector<1x1x8x8xf32>,
    %17 = vector.extract_strided_slice %11 {offsets = [0, 8], sizes = [8, 8], strides = [1, 1]} : vector<8x16xf32> to vector<8x8xf32>
    %c1 = arith.constant 1 : index
    %c0_13 = arith.constant 0 : index
    %c0_14 = arith.constant 0 : index
    %c0_15 = arith.constant 0 : index
    %18 = vector.load %arg4[%c1, %c0_13, %c0_14, %c0_15] : memref<4x1x8x8xf32, #tpu.memory_space<vmem>>, vector<1x1x8x8xf32>
    %19 = vector.shape_cast %18 : vector<1x1x8x8xf32> to vector<8x8xf32>
    %20 = vector.shape_cast %17 : vector<8x8xf32> to vector<1x1x8x8xf32>
    tpu.vector_store %arg4[%c1, %c0_13, %c0_14, %c0_15], %20 {strides = array<i32>} : memref<4x1x8x8xf32, #tpu.memory_space<vmem>>, vector<1x1x8x8xf32>,
    %21 = vector.extract_strided_slice %12 {offsets = [0, 0], sizes = [8, 8], strides = [1, 1]} : vector<8x16xf32> to vector<8x8xf32>
    %c2 = arith.constant 2 : index
    %c0_16 = arith.constant 0 : index
    %c0_17 = arith.constant 0 : index
    %c0_18 = arith.constant 0 : index
    %22 = vector.load %arg4[%c2, %c0_16, %c0_17, %c0_18] : memref<4x1x8x8xf32, #tpu.memory_space<vmem>>, vector<1x1x8x8xf32>
    %23 = vector.shape_cast %22 : vector<1x1x8x8xf32> to vector<8x8xf32>
    %24 = vector.shape_cast %21 : vector<8x8xf32> to vector<1x1x8x8xf32>
    tpu.vector_store %arg4[%c2, %c0_16, %c0_17, %c0_18], %24 {strides = array<i32>} : memref<4x1x8x8xf32, #tpu.memory_space<vmem>>, vector<1x1x8x8xf32>,
    %25 = vector.extract_strided_slice %12 {offsets = [0, 8], sizes = [8, 8], strides = [1, 1]} : vector<8x16xf32> to vector<8x8xf32>
    %c3 = arith.constant 3 : index
    %c0_19 = arith.constant 0 : index
    %c0_20 = arith.constant 0 : index
    %c0_21 = arith.constant 0 : index
    %26 = vector.load %arg4[%c3, %c0_19, %c0_20, %c0_21] : memref<4x1x8x8xf32, #tpu.memory_space<vmem>>, vector<1x1x8x8xf32>
    %27 = vector.shape_cast %26 : vector<1x1x8x8xf32> to vector<8x8xf32>
    %28 = vector.shape_cast %25 : vector<8x8xf32> to vector<1x1x8x8xf32>
    tpu.vector_store %arg4[%c3, %c0_19, %c0_20, %c0_21], %28 {strides = array<i32>} : memref<4x1x8x8xf32, #tpu.memory_space<vmem>>, vector<1x1x8x8xf32>,
    return
  }
  func.func @transform_0(%arg0: i32, %arg1: i32) -> (i32, i32, i32) {
    %c0_i32 = arith.constant 0 : i32
    %c0_i32_0 = arith.constant 0 : i32
    return %arg0, %arg1, %c0_i32 : i32, i32, i32
  }
  func.func @transform_1(%arg0: i32, %arg1: i32) -> (i32, i32) {
    %c0_i32 = arith.constant 0 : i32
    %c0_i32_0 = arith.constant 0 : i32
    %c0_i32_1 = arith.constant 0 : i32
    return %c0_i32, %c0_i32_0 : i32, i32
  }
  func.func @transform_2(%arg0: i32, %arg1: i32) -> (i32, i32, i32, i32) {
    %c0_i32 = arith.constant 0 : i32
    %c0_i32_0 = arith.constant 0 : i32
    %c0_i32_1 = arith.constant 0 : i32
    return %c0_i32, %arg0, %arg1, %c0_i32_0 : i32, i32, i32, i32
  }
}

module attributes {stable_mosaic.version = 11 : i64} {
  func.func @_dwt_presplit_kernel(%arg0: i32, %arg1: i32, %arg2: memref<2x1x8x16xf32, #tpu.memory_space<vmem>>, %arg3: memref<4x1x8x8xf32, #tpu.memory_space<vmem>>) attributes {dimension_semantics = [#tpu.dimension_semantics<parallel>, #tpu.dimension_semantics<parallel>], iteration_bounds = array<i64: 8, 1>, scalar_prefetch = 0 : i64, scratch_operands = 0 : i64, tpu.core_type = #tpu.core_type<tc>, window_params = [{transform_indices = @transform_0, window_bounds = array<i64: 2, 1, 8, 16>}, {transform_indices = @transform_1, window_bounds = array<i64: 4, 1, 8, 8>}]} {
    %c0 = arith.constant 0 : index
    %c0_0 = arith.constant 0 : index
    %c0_1 = arith.constant 0 : index
    %c0_2 = arith.constant 0 : index
    %0 = vector.load %arg2[%c0, %c0_0, %c0_1, %c0_2] : memref<2x1x8x16xf32, #tpu.memory_space<vmem>>, vector<1x1x8x8xf32>
    %1 = vector.shape_cast %0 : vector<1x1x8x8xf32> to vector<8x8xf32>
    %cst = arith.constant 5.000000e-01 : f32
    %2 = vector.broadcast %cst : f32 to vector<8x8xf32>
    %3 = arith.mulf %1, %2 : vector<8x8xf32>
    %c0_3 = arith.constant 0 : index
    %c0_4 = arith.constant 0 : index
    %c0_5 = arith.constant 0 : index
    %c8 = arith.constant 8 : index
    %4 = vector.load %arg2[%c0_3, %c0_4, %c0_5, %c8] : memref<2x1x8x16xf32, #tpu.memory_space<vmem>>, vector<1x1x8x8xf32>
    %5 = vector.shape_cast %4 : vector<1x1x8x8xf32> to vector<8x8xf32>
    %cst_6 = arith.constant 5.000000e-01 : f32
    %6 = vector.broadcast %cst_6 : f32 to vector<8x8xf32>
    %7 = arith.mulf %5, %6 : vector<8x8xf32>
    %c1 = arith.constant 1 : index
    %c0_7 = arith.constant 0 : index
    %c0_8 = arith.constant 0 : index
    %c0_9 = arith.constant 0 : index
    %8 = vector.load %arg2[%c1, %c0_7, %c0_8, %c0_9] : memref<2x1x8x16xf32, #tpu.memory_space<vmem>>, vector<1x1x8x8xf32>
    %9 = vector.shape_cast %8 : vector<1x1x8x8xf32> to vector<8x8xf32>
    %cst_10 = arith.constant 5.000000e-01 : f32
    %10 = vector.broadcast %cst_10 : f32 to vector<8x8xf32>
    %11 = arith.mulf %9, %10 : vector<8x8xf32>
    %c1_11 = arith.constant 1 : index
    %c0_12 = arith.constant 0 : index
    %c0_13 = arith.constant 0 : index
    %c8_14 = arith.constant 8 : index
    %12 = vector.load %arg2[%c1_11, %c0_12, %c0_13, %c8_14] : memref<2x1x8x16xf32, #tpu.memory_space<vmem>>, vector<1x1x8x8xf32>
    %13 = vector.shape_cast %12 : vector<1x1x8x8xf32> to vector<8x8xf32>
    %cst_15 = arith.constant 5.000000e-01 : f32
    %14 = vector.broadcast %cst_15 : f32 to vector<8x8xf32>
    %15 = arith.mulf %13, %14 : vector<8x8xf32>
    %16 = arith.addf %3, %7 : vector<8x8xf32>
    %17 = arith.addf %11, %15 : vector<8x8xf32>
    %18 = arith.subf %7, %3 : vector<8x8xf32>
    %19 = arith.subf %15, %11 : vector<8x8xf32>
    %20 = arith.addf %16, %17 : vector<8x8xf32>
    %c0_16 = arith.constant 0 : index
    %c0_17 = arith.constant 0 : index
    %c0_18 = arith.constant 0 : index
    %c0_19 = arith.constant 0 : index
    %21 = vector.load %arg3[%c0_16, %c0_17, %c0_18, %c0_19] : memref<4x1x8x8xf32, #tpu.memory_space<vmem>>, vector<1x1x8x8xf32>
    %22 = vector.shape_cast %21 : vector<1x1x8x8xf32> to vector<8x8xf32>
    %23 = vector.shape_cast %20 : vector<8x8xf32> to vector<1x1x8x8xf32>
    tpu.vector_store %arg3[%c0_16, %c0_17, %c0_18, %c0_19], %23 {strides = array<i32>} : memref<4x1x8x8xf32, #tpu.memory_space<vmem>>, vector<1x1x8x8xf32>,
    %24 = arith.subf %17, %16 : vector<8x8xf32>
    %c1_20 = arith.constant 1 : index
    %c0_21 = arith.constant 0 : index
    %c0_22 = arith.constant 0 : index
    %c0_23 = arith.constant 0 : index
    %25 = vector.load %arg3[%c1_20, %c0_21, %c0_22, %c0_23] : memref<4x1x8x8xf32, #tpu.memory_space<vmem>>, vector<1x1x8x8xf32>
    %26 = vector.shape_cast %25 : vector<1x1x8x8xf32> to vector<8x8xf32>
    %27 = vector.shape_cast %24 : vector<8x8xf32> to vector<1x1x8x8xf32>
    tpu.vector_store %arg3[%c1_20, %c0_21, %c0_22, %c0_23], %27 {strides = array<i32>} : memref<4x1x8x8xf32, #tpu.memory_space<vmem>>, vector<1x1x8x8xf32>,
    %28 = arith.addf %18, %19 : vector<8x8xf32>
    %c2 = arith.constant 2 : index
    %c0_24 = arith.constant 0 : index
    %c0_25 = arith.constant 0 : index
    %c0_26 = arith.constant 0 : index
    %29 = vector.load %arg3[%c2, %c0_24, %c0_25, %c0_26] : memref<4x1x8x8xf32, #tpu.memory_space<vmem>>, vector<1x1x8x8xf32>
    %30 = vector.shape_cast %29 : vector<1x1x8x8xf32> to vector<8x8xf32>
    %31 = vector.shape_cast %28 : vector<8x8xf32> to vector<1x1x8x8xf32>
    tpu.vector_store %arg3[%c2, %c0_24, %c0_25, %c0_26], %31 {strides = array<i32>} : memref<4x1x8x8xf32, #tpu.memory_space<vmem>>, vector<1x1x8x8xf32>,
    %32 = arith.subf %19, %18 : vector<8x8xf32>
    %c3 = arith.constant 3 : index
    %c0_27 = arith.constant 0 : index
    %c0_28 = arith.constant 0 : index
    %c0_29 = arith.constant 0 : index
    %33 = vector.load %arg3[%c3, %c0_27, %c0_28, %c0_29] : memref<4x1x8x8xf32, #tpu.memory_space<vmem>>, vector<1x1x8x8xf32>
    %34 = vector.shape_cast %33 : vector<1x1x8x8xf32> to vector<8x8xf32>
    %35 = vector.shape_cast %32 : vector<8x8xf32> to vector<1x1x8x8xf32>
    tpu.vector_store %arg3[%c3, %c0_27, %c0_28, %c0_29], %35 {strides = array<i32>} : memref<4x1x8x8xf32, #tpu.memory_space<vmem>>, vector<1x1x8x8xf32>,
    return
  }
  func.func @transform_0(%arg0: i32, %arg1: i32) -> (i32, i32, i32, i32) {
    %c0_i32 = arith.constant 0 : i32
    %c0_i32_0 = arith.constant 0 : i32
    %c0_i32_1 = arith.constant 0 : i32
    return %c0_i32, %arg0, %arg1, %c0_i32_0 : i32, i32, i32, i32
  }
  func.func @transform_1(%arg0: i32, %arg1: i32) -> (i32, i32, i32, i32) {
    %c0_i32 = arith.constant 0 : i32
    %c0_i32_0 = arith.constant 0 : i32
    %c0_i32_1 = arith.constant 0 : i32
    return %c0_i32, %arg0, %arg1, %c0_i32_0 : i32, i32, i32, i32
  }
}

</mosaic_0001>

<llo_original>
// kernel: tpu_custom_call.1
$region0: #{tpu_custom_call.1}
  #allocation0 [shape = 'u32[]', space=smem, size = 0x4, offset = 0x4, fixed_abs, tag = 'smem constant byte address 0x4 - core index']
  #allocation1 [shape = 'u32[144,128]{1,0:T(1,128)}', space=vmem, size = 0x12000, scoped, tag = 'internal scratch']
  %s0 = inlined_call_operand.hbm [shape: f32[1,8,32], index: 0, kind: input, shape index: {}]
  %s1 = inlined_call_operand.hbm [shape: f32[4,1,8,8], index: 1, kind: output, shape index: {}]
  %s2 = sld [smem:[#allocation0]]
  $region18: #{tpu_custom_call.1} parent=0
    _
  %s4 = ssub.s32 1, %s2
  %s5 = scalar_select 0, %s4, %s2
  $region1: #{tpu_custom_call.1} parent=0
    #allocation2 [shape = 'u8[4096]{0}', space=vmem, size = 0x1000, scoped, tag = 'input window, operand 0, single buffered']
    #allocation3 [shape = 's32[1]{0}', space=sflag, size = 0x4, scoped, tag = 'scoped memory for tpu_custom_call.1']
    #allocation4 [shape = 's32[1]{0}', space=sflag, size = 0x4, scoped, tag = 'scoped memory for tpu_custom_call.1']
    #allocation5 [shape = 'u8[16384]{0}', space=vmem, size = 0x4000, scoped, tag = 'output window, operand 0, single buffered']
    %6 = vsyncpa [#allocation3], 0
    %7 = vsyncpa [#allocation4], 0
    // Predicated region
    $region2: #{tpu_custom_call.1} parent=1 // pred_check
      _
    $region3: #{tpu_custom_call.1} parent=1 // pred_check_branch
      %9 = sbr.rel (0) target = $region5
    $region4: #{tpu_custom_call.1} parent=1 // pred_region
      %s11 = ssub.s32 128, 128
      %12 = vsyncadd [#allocation3], %s11
      %s14 = sshll.u32 [#allocation2], 4
      %s15 = int_to_ptr.vmem [resolvable:$true] %s14
      %17 = dma.hbm_to_vmem [thread:$0]  %s0, 128, %s15, [#allocation3]
    $region5: #{tpu_custom_call.1} parent=1 // pred_fallthru
      _
    // Predicated region
    $region6: #{tpu_custom_call.1} parent=1 // pred_check
      _
    $region7: #{tpu_custom_call.1} parent=1 // pred_check_branch
      %19 = sbr.rel (0) target = $region9
    $region8: #{tpu_custom_call.1} parent=1 // pred_region
      %20 = dma.done [#allocation3], 128
    $region9: #{tpu_custom_call.1} parent=1 // pred_fallthru
      _
    %v21 = vld [vmem:[#allocation2] sm:$0xff]
    %23 = vrot.lane.b32.xlu0 %v21, 112
    %v24 = vpop.permute.xlu0 %23
    %v26 = vadd.f32 %v21, %v24
    %v27 = vmul.f32 %v26, 0.5
    %28 = vrot.lane.b32.xlu0 %v21, 16
    %v29 = vpop.permute.xlu0 %28
    %v31 = vsub.f32 %v21, %v29
    %v32 = vmul.f32 %v31, 0.5
    %v33 = vlaneseq
    %v34 = vand.u32 %v33, 127
    %v35 = vmul.u32 %v34, 2
    %vm36 = vcmp.lt.s32.totalorder %v35, 0
    %v37 = vadd.s32 %v35, 16
    %v38 = vsel %vm36, %v37, %v35
    %39 = vset.pattern.permute.xlu0 %v38
    %40 = vperm.xlu0 %39, %v27
    %v41 = vpop.permute.xlu0 %40
    %v42 = vadd.s32 %v35, 1
    %vm43 = vcmp.lt.s32.totalorder %v42, 0
    %v44 = vadd.s32 %v42, 16
    %v45 = vsel %vm43, %v44, %v42
    %46 = vset.pattern.permute.xlu0 %v45
    %47 = vperm.xlu0 %46, %v27
    %v48 = vpop.permute.xlu0 %47
    %50 = vrot.lane.b32.xlu0 %v32, 112
    %v51 = vpop.permute.xlu0 %50
    %53 = vset.pattern.permute.xlu0 %v38
    %54 = vperm.xlu0 %53, %v51
    %v55 = vpop.permute.xlu0 %54
    %56 = vset.pattern.permute.xlu0 %v45
    %57 = vperm.xlu0 %56, %v51
    %v58 = vpop.permute.xlu0 %57
    %v59 = vadd.f32 %v41, %v48
    %vm60 = vcmask 64512
    %61 = vst.msk [vmem:[#allocation5] sm:$0xff] %vm60, %v59
    %v62 = vsub.f32 %v48, %v41
    %s63 = scalar_lea.vmem [#allocation5], 8
    %64 = vst.msk [vmem:[%s63] sm:$0xff] %vm60, %v62
    %v65 = vadd.f32 %v55, %v58
    %s66 = scalar_lea.vmem [#allocation5], 16
    %67 = vst.msk [vmem:[%s66] sm:$0xff] %vm60, %v65
    %v68 = vsub.f32 %v58, %v55
    %s69 = scalar_lea.vmem [#allocation5], 24
    %70 = vst.msk [vmem:[%s69] sm:$0xff] %vm60, %v68
    // Predicated region
    $region10: #{tpu_custom_call.1} parent=1 // pred_check
      _
    $region11: #{tpu_custom_call.1} parent=1 // pred_check_branch
      %72 = sbr.rel (0) target = $region13
    $region12: #{tpu_custom_call.1} parent=1 // pred_region
      %s74 = ssub.s32 512, 512
      %75 = vsyncadd [#allocation4], %s74
      %s76 = sshll.u32 [#allocation5], 4
      %s77 = int_to_ptr.vmem [resolvable:$true] %s76
      %82 = dma.vmem_to_hbm [thread:$0]  %s77, 512, %s1, [#allocation4], 128, 128, 8
    $region13: #{tpu_custom_call.1} parent=1 // pred_fallthru
      _
    // Predicated region
    $region14: #{tpu_custom_call.1} parent=1 // pred_check
      _
    $region15: #{tpu_custom_call.1} parent=1 // pred_check_branch
      %84 = sbr.rel (0) target = $region17
    $region16: #{tpu_custom_call.1} parent=1 // pred_region
      %85 = dma.done [#allocation4], 512
    $region17: #{tpu_custom_call.1} parent=1 // pred_fallthru
      _
    %86 = vsyncpa [#allocation3], 1
    %87 = vsyncpa [#allocation4], 1

// kernel: tpu_custom_call.1
$region0: #{tpu_custom_call.1}
  #allocation0 [shape = 'u32[]', space=smem, size = 0x4, offset = 0x4, fixed_abs, tag = 'smem constant byte address 0x4 - core index']
  #allocation1 [shape = 'u32[144,128]{1,0:T(1,128)}', space=vmem, size = 0x12000, scoped, tag = 'internal scratch']
  %s0 = inlined_call_operand.hbm [shape: f32[1,8,32], index: 0, kind: input, shape index: {}]
  %s1 = inlined_call_operand.hbm [shape: f32[4,1,8,8], index: 1, kind: output, shape index: {}]
  %s2 = sld [smem:[#allocation0]]
  $region18: #{tpu_custom_call.1} parent=0
    _
  %s4 = ssub.s32 1, %s2
  %s5 = scalar_select 0, %s4, %s2
  $region1: #{tpu_custom_call.1} parent=0
    #allocation2 [shape = 'u8[4096]{0}', space=vmem, size = 0x1000, scoped, tag = 'input window, operand 0, single buffered']
    #allocation3 [shape = 's32[1]{0}', space=sflag, size = 0x4, scoped, tag = 'scoped memory for tpu_custom_call.1']
    #allocation4 [shape = 's32[1]{0}', space=sflag, size = 0x4, scoped, tag = 'scoped memory for tpu_custom_call.1']
    #allocation5 [shape = 'u8[16384]{0}', space=vmem, size = 0x4000, scoped, tag = 'output window, operand 0, single buffered']
    %6 = vsyncpa [#allocation3], 0
    %7 = vsyncpa [#allocation4], 0
    // Predicated region
    $region2: #{tpu_custom_call.1} parent=1 // pred_check
      _
    $region3: #{tpu_custom_call.1} parent=1 // pred_check_branch
      %9 = sbr.rel (0) target = $region5
    $region4: #{tpu_custom_call.1} parent=1 // pred_region
      %s11 = ssub.s32 128, 128
      %12 = vsyncadd [#allocation3], %s11
      %s14 = sshll.u32 [#allocation2], 4
      %s15 = int_to_ptr.vmem [resolvable:$true] %s14
      %17 = dma.hbm_to_vmem [thread:$0]  %s0, 128, %s15, [#allocation3]
    $region5: #{tpu_custom_call.1} parent=1 // pred_fallthru
      _
    // Predicated region
    $region6: #{tpu_custom_call.1} parent=1 // pred_check
      _
    $region7: #{tpu_custom_call.1} parent=1 // pred_check_branch
      %19 = sbr.rel (0) target = $region9
    $region8: #{tpu_custom_call.1} parent=1 // pred_region
      %20 = dma.done [#allocation3], 128
    $region9: #{tpu_custom_call.1} parent=1 // pred_fallthru
      _
    %v21 = vld [vmem:[#allocation2] sm:$0xff]
    %23 = vrot.lane.b32.xlu0 %v21, 112
    %v24 = vpop.permute.xlu0 %23
    %v26 = vadd.f32 %v21, %v24
    %v27 = vmul.f32 %v26, 0.5
    %28 = vrot.lane.b32.xlu0 %v21, 16
    %v29 = vpop.permute.xlu0 %28
    %v31 = vsub.f32 %v21, %v29
    %v32 = vmul.f32 %v31, 0.5
    %v33 = vlaneseq
    %v34 = vand.u32 %v33, 127
    %v35 = vmul.u32 %v34, 2
    %vm36 = vcmp.lt.s32.totalorder %v35, 0
    %v37 = vadd.s32 %v35, 16
    %v38 = vsel %vm36, %v37, %v35
    %39 = vset.pattern.permute.xlu0 %v38
    %40 = vperm.xlu0 %39, %v27
    %v41 = vpop.permute.xlu0 %40
    %v42 = vadd.s32 %v35, 1
    %vm43 = vcmp.lt.s32.totalorder %v42, 0
    %v44 = vadd.s32 %v42, 16
    %v45 = vsel %vm43, %v44, %v42
    %46 = vset.pattern.permute.xlu0 %v45
    %47 = vperm.xlu0 %46, %v27
    %v48 = vpop.permute.xlu0 %47
    %50 = vrot.lane.b32.xlu0 %v32, 112
    %v51 = vpop.permute.xlu0 %50
    %53 = vset.pattern.permute.xlu0 %v38
    %54 = vperm.xlu0 %53, %v51
    %v55 = vpop.permute.xlu0 %54
    %56 = vset.pattern.permute.xlu0 %v45
    %57 = vperm.xlu0 %56, %v51
    %v58 = vpop.permute.xlu0 %57
    %v59 = vadd.f32 %v41, %v48
    %vm60 = vcmask 64512
    %61 = vst.msk [vmem:[#allocation5] sm:$0xff] %vm60, %v59
    %v62 = vsub.f32 %v48, %v41
    %s63 = scalar_lea.vmem [#allocation5], 8
    %64 = vst.msk [vmem:[%s63] sm:$0xff] %vm60, %v62
    %v65 = vadd.f32 %v55, %v58
    %s66 = scalar_lea.vmem [#allocation5], 16
    %67 = vst.msk [vmem:[%s66] sm:$0xff] %vm60, %v65
    %v68 = vsub.f32 %v58, %v55
    %s69 = scalar_lea.vmem [#allocation5], 24
    %70 = vst.msk [vmem:[%s69] sm:$0xff] %vm60, %v68
    // Predicated region
    $region10: #{tpu_custom_call.1} parent=1 // pred_check
      _
    $region11: #{tpu_custom_call.1} parent=1 // pred_check_branch
      %72 = sbr.rel (0) target = $region13
    $region12: #{tpu_custom_call.1} parent=1 // pred_region
      %s74 = ssub.s32 512, 512
      %75 = vsyncadd [#allocation4], %s74
      %s76 = sshll.u32 [#allocation5], 4
      %s77 = int_to_ptr.vmem [resolvable:$true] %s76
      %82 = dma.vmem_to_hbm [thread:$0]  %s77, 512, %s1, [#allocation4], 128, 128, 8
    $region13: #{tpu_custom_call.1} parent=1 // pred_fallthru
      _
    // Predicated region
    $region14: #{tpu_custom_call.1} parent=1 // pred_check
      _
    $region15: #{tpu_custom_call.1} parent=1 // pred_check_branch
      %84 = sbr.rel (0) target = $region17
    $region16: #{tpu_custom_call.1} parent=1 // pred_region
      %85 = dma.done [#allocation4], 512
    $region17: #{tpu_custom_call.1} parent=1 // pred_fallthru
      _
    %86 = vsyncpa [#allocation3], 1
    %87 = vsyncpa [#allocation4], 1

// kernel: tpu_custom_call.1
$region0: #{tpu_custom_call.1}
  #allocation0 [shape = 'u32[]', space=smem, size = 0x4, offset = 0x4, fixed_abs, tag = 'smem constant byte address 0x4 - core index']
  #allocation1 [shape = 'u32[144,128]{1,0:T(1,128)}', space=vmem, size = 0x12000, scoped, tag = 'internal scratch']
  %s0 = inlined_call_operand.hbm [shape: f32[1,8,512], index: 0, kind: input, shape index: {}]
  %s1 = inlined_call_operand.hbm [shape: f32[256,256], index: 1, kind: input, shape index: {}]
  %s2 = inlined_call_operand.hbm [shape: f32[4,1,8,128], index: 2, kind: output, shape index: {}]
  %s3 = sld [smem:[#allocation0]]
  $region26: #{tpu_custom_call.1} parent=0
    _
  %s5 = ssub.s32 1, %s3
  %s6 = scalar_select 0, %s5, %s3
  $region1: #{tpu_custom_call.1} parent=0
    #allocation2 [shape = 'u8[16384]{0}', space=vmem, size = 0x4000, scoped, tag = 'input window, operand 0, single buffered']
    #allocation3 [shape = 's32[1]{0}', space=sflag, size = 0x4, scoped, tag = 'scoped memory for tpu_custom_call.1']
    #allocation4 [shape = 's32[1]{0}', space=sflag, size = 0x4, scoped, tag = 'scoped memory for tpu_custom_call.1']
    #allocation5 [shape = 'u8[262144]{0}', space=vmem, size = 0x40000, scoped, tag = 'input window, operand 1, single buffered']
    #allocation6 [shape = 's32[1]{0}', space=sflag, size = 0x4, scoped, tag = 'scoped memory for tpu_custom_call.1']
    #allocation7 [shape = 'u8[16384]{0}', space=vmem, size = 0x4000, scoped, tag = 'output window, operand 0, single buffered']
    %7 = vsyncpa [#allocation3], 0
    %8 = vsyncpa [#allocation6], 0
    %9 = vsyncpa [#allocation4], 0
    // Predicated region
    $region2: #{tpu_custom_call.1} parent=1 // pred_check
      _
    $region3: #{tpu_custom_call.1} parent=1 // pred_check_branch
      %11 = sbr.rel (0) target = $region5
    $region4: #{tpu_custom_call.1} parent=1 // pred_region
      %s13 = ssub.s32 512, 512
      %14 = vsyncadd [#allocation3], %s13
      %s16 = sshll.u32 [#allocation2], 4
      %s17 = int_to_ptr.vmem [resolvable:$true] %s16
      %19 = dma.hbm_to_vmem [thread:$0]  %s0, 512, %s17, [#allocation3]
    $region5: #{tpu_custom_call.1} parent=1 // pred_fallthru
      _
    // Predicated region
    $region6: #{tpu_custom_call.1} parent=1 // pred_check
      _
    $region7: #{tpu_custom_call.1} parent=1 // pred_check_branch
      %21 = sbr.rel (0) target = $region9
    $region8: #{tpu_custom_call.1} parent=1 // pred_region
      %s23 = ssub.s32 8192, 8192
      %24 = vsyncadd [#allocation6], %s23
      %s25 = sshll.u32 [#allocation5], 4
      %s26 = int_to_ptr.vmem [resolvable:$true] %s25
      %31 = dma.hbm_to_vmem [thread:$0]  %s1, 8192, %s26, [#allocation6], 256, 256, 16
    $region9: #{tpu_custom_call.1} parent=1 // pred_fallthru
      _
    // Predicated region
    $region10: #{tpu_custom_call.1} parent=1 // pred_check
      _
    $region11: #{tpu_custom_call.1} parent=1 // pred_check_branch
      %33 = sbr.rel (0) target = $region13
    $region12: #{tpu_custom_call.1} parent=1 // pred_region
      %34 = dma.done [#allocation3], 512
    $region13: #{tpu_custom_call.1} parent=1 // pred_fallthru
      _
    // Predicated region
    $region14: #{tpu_custom_call.1} parent=1 // pred_check
      _
    $region15: #{tpu_custom_call.1} parent=1 // pred_check_branch
      %36 = sbr.rel (0) target = $region17
    $region16: #{tpu_custom_call.1} parent=1 // pred_region
      %37 = dma.done [#allocation6], 8192
    $region17: #{tpu_custom_call.1} parent=1 // pred_fallthru
      _
    %v38 = vld [vmem:[#allocation2] sm:$0xff]
    %v39 = vld [vmem:[#allocation2 + $0x8] sm:$0xff]
    %v40 = vld [vmem:[#allocation2 + $0x10] sm:$0xff]
    %v41 = vld [vmem:[#allocation2 + $0x18] sm:$0xff]
    %v42 = vadd.f32 %v38, %v40
    %v43 = vadd.f32 %v39, %v41
    %v44 = vmul.f32 %v42, 0.5
    %v45 = vmul.f32 %v43, 0.5
    %v46 = vsub.f32 %v40, %v38
    %v47 = vsub.f32 %v41, %v39
    %v48 = vmul.f32 %v46, 0.5
    %v49 = vmul.f32 %v47, 0.5
    %v50 = vld [vmem:[#allocation5] sm:$0xff]
    %v51 = vld [vmem:[#allocation5 + $0x8] sm:$0xff]
    %v52 = vld [vmem:[#allocation5 + $0x10] sm:$0xff]
    %v53 = vld [vmem:[#allocation5 + $0x18] sm:$0xff]
    %v54 = vld [vmem:[#allocation5 + $0x20] sm:$0xff]
    %v55 = vld [vmem:[#allocation5 + $0x28] sm:$0xff]
    %v56 = vld [vmem:[#allocation5 + $0x30] sm:$0xff]
    %v57 = vld [vmem:[#allocation5 + $0x38] sm:$0xff]
    %v58 = vld [vmem:[#allocation5 + $0x40] sm:$0xff]
    %v59 = vld [vmem:[#allocation5 + $0x48] sm:$0xff]
    %v60 = vld [vmem:[#allocation5 + $0x50] sm:$0xff]
    %v61 = vld [vmem:[#allocation5 + $0x58] sm:$0xff]
    %v62 = vld [vmem:[#allocation5 + $0x60] sm:$0xff]
    %v63 = vld [vmem:[#allocation5 + $0x68] sm:$0xff]
    %v64 = vld [vmem:[#allocation5 + $0x70] sm:$0xff]
    %v65 = vld [vmem:[#allocation5 + $0x78] sm:$0xff]
    %v66 = vld [vmem:[#allocation5 + $0x80] sm:$0xff]
    %v67 = vld [vmem:[#allocation5 + $0x88] sm:$0xff]
    %v68 = vld [vmem:[#allocation5 + $0x90] sm:$0xff]
    %v69 = vld [vmem:[#allocation5 + $0x98] sm:$0xff]
    %v70 = vld [vmem:[#allocation5 + $0xa0] sm:$0xff]
    %v71 = vld [vmem:[#allocation5 + $0xa8] sm:$0xff]
    %v72 = vld [vmem:[#allocation5 + $0xb0] sm:$0xff]
    %v73 = vld [vmem:[#allocation5 + $0xb8] sm:$0xff]
    %v74 = vld [vmem:[#allocation5 + $0xc0] sm:$0xff]
    %v75 = vld [vmem:[#allocation5 + $0xc8] sm:$0xff]
    %v76 = vld [vmem:[#allocation5 + $0xd0] sm:$0xff]
    %v77 = vld [vmem:[#allocation5 + $0xd8] sm:$0xff]
    %v78 = vld [vmem:[#allocation5 + $0xe0] sm:$0xff]
    %v79 = vld [vmem:[#allocation5 + $0xe8] sm:$0xff]
    %v80 = vld [vmem:[#allocation5 + $0xf0] sm:$0xff]
    %v81 = vld [vmem:[#allocation5 + $0xf8] sm:$0xff]
    %v82 = vld [vmem:[#allocation5 + $0x100] sm:$0xff]
    %v83 = vld [vmem:[#allocation5 + $0x108] sm:$0xff]
    %v84 = vld [vmem:[#allocation5 + $0x110] sm:$0xff]
    %v85 = vld [vmem:[#allocation5 + $0x118] sm:$0xff]
    %v86 = vld [vmem:[#allocation5 + $0x120] sm:$0xff]
    %v87 = vld [vmem:[#allocation5 + $0x128] sm:$0xff]
    %v88 = vld [vmem:[#allocation5 + $0x130] sm:$0xff]
    %v89 = vld [vmem:[#allocation5 + $0x138] sm:$0xff]
    %v90 = vld [vmem:[#allocation5 + $0x140] sm:$0xff]
    %v91 = vld [vmem:[#allocation5 + $0x148] sm:$0xff]
    %v92 = vld [vmem:[#allocation5 + $0x150] sm:$0xff]
    %v93 = vld [vmem:[#allocation5 + $0x158] sm:$0xff]
    %v94 = vld [vmem:[#allocation5 + $0x160] sm:$0xff]
    %v95 = vld [vmem:[#allocation5 + $0x168] sm:$0xff]
    %v96 = vld [vmem:[#allocation5 + $0x170] sm:$0xff]
    %v97 = vld [vmem:[#allocation5 + $0x178] sm:$0xff]
    %v98 = vld [vmem:[#allocation5 + $0x180] sm:$0xff]
    %v99 = vld [vmem:[#allocation5 + $0x188] sm:$0xff]
    %v100 = vld [vmem:[#allocation5 + $0x190] sm:$0xff]
    %v101 = vld [vmem:[#allocation5 + $0x198] sm:$0xff]
    %v102 = vld [vmem:[#allocation5 + $0x1a0] sm:$0xff]
    %v103 = vld [vmem:[#allocation5 + $0x1a8] sm:$0xff]
    %v104 = vld [vmem:[#allocation5 + $0x1b0] sm:$0xff]
    %v105 = vld [vmem:[#allocation5 + $0x1b8] sm:$0xff]
    %v106 = vld [vmem:[#allocation5 + $0x1c0] sm:$0xff]
    %v107 = vld [vmem:[#allocation5 + $0x1c8] sm:$0xff]
    %v108 = vld [vmem:[#allocation5 + $0x1d0] sm:$0xff]
    %v109 = vld [vmem:[#allocation5 + $0x1d8] sm:$0xff]
    %v110 = vld [vmem:[#allocation5 + $0x1e0] sm:$0xff]
    %v111 = vld [vmem:[#allocation5 + $0x1e8] sm:$0xff]
    %v112 = vld [vmem:[#allocation5 + $0x1f0] sm:$0xff]
    %v113 = vld [vmem:[#allocation5 + $0x1f8] sm:$0xff]
    %114 = vmatprep.subr.mxu0 %v51
    %115 = vmatpush1.msra.mxu0 %v50
    %116 = vmatprep.subr.mxu0 %v53
    %117 = vmatpush1.msra.mxu0 %v52
    %118 = vmatprep.subr.mxu0 %v55
    %119 = vmatpush1.msra.mxu0 %v54
    %120 = vmatprep.subr.mxu0 %v57
    %121 = vmatpush1.msra.mxu0 %v56
    %122 = vmatprep.subr.mxu0 %v59
    %123 = vmatpush1.msra.mxu0 %v58
    %124 = vmatprep.subr.mxu0 %v61
    %125 = vmatpush1.msra.mxu0 %v60
    %126 = vmatprep.subr.mxu0 %v63
    %127 = vmatpush1.msra.mxu0 %v62
    %128 = vmatprep.subr.mxu0 %v65
    %129 = vmatpush1.msra.mxu0 %v64
    %130 = vmatprep.subr.mxu0 %v67
    %131 = vmatpush1.msra.mxu0 %v66
    %132 = vmatprep.subr.mxu0 %v69
    %133 = vmatpush1.msra.mxu0 %v68
    %134 = vmatprep.subr.mxu0 %v71
    %135 = vmatpush1.msra.mxu0 %v70
    %136 = vmatprep.subr.mxu0 %v73
    %137 = vmatpush1.msra.mxu0 %v72
    %138 = vmatprep.subr.mxu0 %v75
    %139 = vmatpush1.msra.mxu0 %v74
    %140 = vmatprep.subr.mxu0 %v77
    %141 = vmatpush1.msra.mxu0 %v76
    %142 = vmatprep.subr.mxu0 %v79
    %143 = vmatpush1.msra.mxu0 %v78
    %144 = vmatprep.subr.mxu0 %v81
    %145 = vmatpush1.msra.mxu0 %v80
    %146 = vmatprep.subr.mxu0 %v83
    %147 = vmatpush1.msra.mxu0 %v82
    %148 = vmatprep.subr.mxu0 %v85
    %149 = vmatpush1.msra.mxu0 %v84
    %150 = vmatprep.subr.mxu0 %v87
    %151 = vmatpush1.msra.mxu0 %v86
    %152 = vmatprep.subr.mxu0 %v89
    %153 = vmatpush1.msra.mxu0 %v88
    %154 = vmatprep.subr.mxu0 %v91
    %155 = vmatpush1.msra.mxu0 %v90
    %156 = vmatprep.subr.mxu0 %v93
    %157 = vmatpush1.msra.mxu0 %v92
    %158 = vmatprep.subr.mxu0 %v95
    %159 = vmatpush1.msra.mxu0 %v94
    %160 = vmatprep.subr.mxu0 %v97
    %161 = vmatpush1.msra.mxu0 %v96
    %162 = vmatprep.subr.mxu0 %v99
    %163 = vmatpush1.msra.mxu0 %v98
    %164 = vmatprep.subr.mxu0 %v101
    %165 = vmatpush1.msra.mxu0 %v100
    %166 = vmatprep.subr.mxu0 %v103
    %167 = vmatpush1.msra.mxu0 %v102
    %168 = vmatprep.subr.mxu0 %v105
    %169 = vmatpush1.msra.mxu0 %v104
    %170 = vmatprep.subr.mxu0 %v107
    %171 = vmatpush1.msra.mxu0 %v106
    %172 = vmatprep.subr.mxu0 %v109
    %173 = vmatpush1.msra.mxu0 %v108
    %174 = vmatprep.subr.mxu0 %v111
    %175 = vmatpush1.msra.mxu0 %v110
    %176 = vmatprep.subr.mxu0 %v113
    %177 = vmatpush1.msra.mxu0 %v112
    %178 = vmatprep.mubr.f32.mxu0 %v45
    %179 = vmatmul.mubr.f32.gmra.mrb[0].mxu0 %v44
    %v180 = vpop.f32.mrb[0].mxu0
    %v181 = vadd.f32 0.0, %v180
    %v182 = vpop.f32.mrb[0].mxu0
    %v183 = vadd.f32 0.0, %v182
    %184 = vdwg.mxu0
    %185 = vmatprep.subr.mxu0 %v51
    %186 = vmatpush1.msra.mxu0 %v50
    %187 = vmatprep.subr.mxu0 %v53
    %188 = vmatpush1.msra.mxu0 %v52
    %189 = vmatprep.subr.mxu0 %v55
    %190 = vmatpush1.msra.mxu0 %v54
    %191 = vmatprep.subr.mxu0 %v57
    %192 = vmatpush1.msra.mxu0 %v56
    %193 = vmatprep.subr.mxu0 %v59
    %194 = vmatpush1.msra.mxu0 %v58
    %195 = vmatprep.subr.mxu0 %v61
    %196 = vmatpush1.msra.mxu0 %v60
    %197 = vmatprep.subr.mxu0 %v63
    %198 = vmatpush1.msra.mxu0 %v62
    %199 = vmatprep.subr.mxu0 %v65
    %200 = vmatpush1.msra.mxu0 %v64
    %201 = vmatprep.subr.mxu0 %v67
    %202 = vmatpush1.msra.mxu0 %v66
    %203 = vmatprep.subr.mxu0 %v69
    %204 = vmatpush1.msra.mxu0 %v68
    %205 = vmatprep.subr.mxu0 %v71
    %206 = vmatpush1.msra.mxu0 %v70
    %207 = vmatprep.subr.mxu0 %v73
    %208 = vmatpush1.msra.mxu0 %v72
    %209 = vmatprep.subr.mxu0 %v75
    %210 = vmatpush1.msra.mxu0 %v74
    %211 = vmatprep.subr.mxu0 %v77
    %212 = vmatpush1.msra.mxu0 %v76
    %213 = vmatprep.subr.mxu0 %v79
    %214 = vmatpush1.msra.mxu0 %v78
    %215 = vmatprep.subr.mxu0 %v81
    %216 = vmatpush1.msra.mxu0 %v80
    %217 = vmatprep.subr.mxu0 %v83
    %218 = vmatpush1.msra.mxu0 %v82
    %219 = vmatprep.subr.mxu0 %v85
    %220 = vmatpush1.msra.mxu0 %v84
    %221 = vmatprep.subr.mxu0 %v87
    %222 = vmatpush1.msra.mxu0 %v86
    %223 = vmatprep.subr.mxu0 %v89
    %224 = vmatpush1.msra.mxu0 %v88
    %225 = vmatprep.subr.mxu0 %v91
    %226 = vmatpush1.msra.mxu0 %v90
    %227 = vmatprep.subr.mxu0 %v93
    %228 = vmatpush1.msra.mxu0 %v92
    %229 = vmatprep.subr.mxu0 %v95
    %230 = vmatpush1.msra.mxu0 %v94
    %231 = vmatprep.subr.mxu0 %v97
    %232 = vmatpush1.msra.mxu0 %v96
    %233 = vmatprep.subr.mxu0 %v99
    %234 = vmatpush1.msra.mxu0 %v98
    %235 = vmatprep.subr.mxu0 %v101
    %236 = vmatpush1.msra.mxu0 %v100
    %237 = vmatprep.subr.mxu0 %v103
    %238 = vmatpush1.msra.mxu0 %v102
    %239 = vmatprep.subr.mxu0 %v105
    %240 = vmatpush1.msra.mxu0 %v104
    %241 = vmatprep.subr.mxu0 %v107
    %242 = vmatpush1.msra.mxu0 %v106
    %243 = vmatprep.subr.mxu0 %v109
    %244 = vmatpush1.msra.mxu0 %v108
    %245 = vmatprep.subr.mxu0 %v111
    %246 = vmatpush1.msra.mxu0 %v110
    %247 = vmatprep.subr.mxu0 %v113
    %248 = vmatpush1.msra.mxu0 %v112
    %249 = vmatprep.mubr.f32.mxu0 %v49
    %250 = vmatmul.mubr.f32.gmra.mrb[0].mxu0 %v48
    %v251 = vpop.f32.mrb[0].mxu0
    %v252 = vadd.f32 0.0, %v251
    %v253 = vpop.f32.mrb[0].mxu0
    %v254 = vadd.f32 0.0, %v253
    %255 = vdwg.mxu0
    %256 = vst [vmem:[#allocation7] sm:$0xff] %v181
    %s257 = scalar_lea.vmem [#allocation7], 8
    %258 = vst [vmem:[%s257] sm:$0xff] %v183
    %s259 = scalar_lea.vmem [#allocation7], 16
    %260 = vst [vmem:[%s259] sm:$0xff] %v252
    %s261 = scalar_lea.vmem [#allocation7], 24
    %262 = vst [vmem:[%s261] sm:$0xff] %v254
    // Predicated region
    $region18: #{tpu_custom_call.1} parent=1 // pred_check
      _
    $region19: #{tpu_custom_call.1} parent=1 // pred_check_branch
      %264 = sbr.rel (0) target = $region21
    $region20: #{tpu_custom_call.1} parent=1 // pred_region
      %s266 = ssub.s32 512, 512
      %267 = vsyncadd [#allocation4], %s266
      %s268 = sshll.u32 [#allocation7], 4
      %s269 = int_to_ptr.vmem [resolvable:$true] %s268
      %274 = dma.vmem_to_hbm [thread:$0]  %s269, 512, %s2, [#allocation4], 128, 128, 8
    $region21: #{tpu_custom_call.1} parent=1 // pred_fallthru
      _
    // Predicated region
    $region22: #{tpu_custom_call.1} parent=1 // pred_check
      _
    $region23: #{tpu_custom_call.1} parent=1 // pred_check_branch
      %276 = sbr.rel (0) target = $region25
    $region24: #{tpu_custom_call.1} parent=1 // pred_region
      %277 = dma.done [#allocation4], 512
    $region25: #{tpu_custom_call.1} parent=1 // pred_fallthru
      _
    %278 = vsyncpa [#allocation3], 1
    %279 = vsyncpa [#allocation6], 1
    %280 = vsyncpa [#allocation4], 1

// kernel: tpu_custom_call.1
$region0: #{tpu_custom_call.1}
  #allocation0 [shape = 'u32[]', space=smem, size = 0x4, offset = 0x4, fixed_abs, tag = 'smem constant byte address 0x4 - core index']
  #allocation1 [shape = 'u32[144,128]{1,0:T(1,128)}', space=vmem, size = 0x12000, scoped, tag = 'internal scratch']
  %s0 = inlined_call_operand.hbm [shape: f32[1,8,32], index: 0, kind: input, shape index: {}]
  %s1 = inlined_call_operand.hbm [shape: f32[16,16], index: 1, kind: input, shape index: {}]
  %s2 = inlined_call_operand.hbm [shape: f32[4,1,8,8], index: 2, kind: output, shape index: {}]
  %s3 = sld [smem:[#allocation0]]
  $region26: #{tpu_custom_call.1} parent=0
    _
  %s5 = ssub.s32 1, %s3
  %s6 = scalar_select 0, %s5, %s3
  $region1: #{tpu_custom_call.1} parent=0
    #allocation2 [shape = 'u8[4096]{0}', space=vmem, size = 0x1000, scoped, tag = 'input window, operand 0, single buffered']
    #allocation3 [shape = 's32[1]{0}', space=sflag, size = 0x4, scoped, tag = 'scoped memory for tpu_custom_call.1']
    #allocation4 [shape = 's32[1]{0}', space=sflag, size = 0x4, scoped, tag = 'scoped memory for tpu_custom_call.1']
    #allocation5 [shape = 'u8[8192]{0}', space=vmem, size = 0x2000, scoped, tag = 'input window, operand 1, single buffered']
    #allocation6 [shape = 's32[1]{0}', space=sflag, size = 0x4, scoped, tag = 'scoped memory for tpu_custom_call.1']
    #allocation7 [shape = 'u8[16384]{0}', space=vmem, size = 0x4000, scoped, tag = 'output window, operand 0, single buffered']
    %7 = vsyncpa [#allocation3], 0
    %8 = vsyncpa [#allocation6], 0
    %9 = vsyncpa [#allocation4], 0
    // Predicated region
    $region2: #{tpu_custom_call.1} parent=1 // pred_check
      _
    $region3: #{tpu_custom_call.1} parent=1 // pred_check_branch
      %11 = sbr.rel (0) target = $region5
    $region4: #{tpu_custom_call.1} parent=1 // pred_region
      %s13 = ssub.s32 128, 128
      %14 = vsyncadd [#allocation3], %s13
      %s16 = sshll.u32 [#allocation2], 4
      %s17 = int_to_ptr.vmem [resolvable:$true] %s16
      %19 = dma.hbm_to_vmem [thread:$0]  %s0, 128, %s17, [#allocation3]
    $region5: #{tpu_custom_call.1} parent=1 // pred_fallthru
      _
    // Predicated region
    $region6: #{tpu_custom_call.1} parent=1 // pred_check
      _
    $region7: #{tpu_custom_call.1} parent=1 // pred_check_branch
      %21 = sbr.rel (0) target = $region9
    $region8: #{tpu_custom_call.1} parent=1 // pred_region
      %s23 = ssub.s32 256, 256
      %24 = vsyncadd [#allocation6], %s23
      %s25 = sshll.u32 [#allocation5], 4
      %s26 = int_to_ptr.vmem [resolvable:$true] %s25
      %31 = dma.hbm_to_vmem [thread:$0]  %s1, 256, %s26, [#allocation6], 128, 128, 8
    $region9: #{tpu_custom_call.1} parent=1 // pred_fallthru
      _
    // Predicated region
    $region10: #{tpu_custom_call.1} parent=1 // pred_check
      _
    $region11: #{tpu_custom_call.1} parent=1 // pred_check_branch
      %33 = sbr.rel (0) target = $region13
    $region12: #{tpu_custom_call.1} parent=1 // pred_region
      %34 = dma.done [#allocation3], 128
    $region13: #{tpu_custom_call.1} parent=1 // pred_fallthru
      _
    // Predicated region
    $region14: #{tpu_custom_call.1} parent=1 // pred_check
      _
    $region15: #{tpu_custom_call.1} parent=1 // pred_check_branch
      %36 = sbr.rel (0) target = $region17
    $region16: #{tpu_custom_call.1} parent=1 // pred_region
      %37 = dma.done [#allocation6], 256
    $region17: #{tpu_custom_call.1} parent=1 // pred_fallthru
      _
    %v38 = vld [vmem:[#allocation2] sm:$0xff]
    %40 = vrot.lane.b32.xlu0 %v38, 112
    %v41 = vpop.permute.xlu0 %40
    %v43 = vadd.f32 %v38, %v41
    %v44 = vmul.f32 %v43, 0.5
    %45 = vrot.lane.b32.xlu0 %v38, 16
    %v46 = vpop.permute.xlu0 %45
    %v48 = vsub.f32 %v38, %v46
    %v49 = vmul.f32 %v48, 0.5
    %v50 = vld [vmem:[#allocation5] sm:$0xff]
    %v51 = vld [vmem:[#allocation5 + $0x8] sm:$0xff]
    %vm52 = vcmask 130048
    %v54 = vsel %vm52, %v44, 0
    %56 = vmatprep.subr.mxu0 0.0
    %57 = vmatpush1.msra.mxu0 %v50
    %58 = vmatprep.subr.mxu0 0.0
    %59 = vmatpush1.msra.mxu0 %v51
    %60 = vmatprep.subr.mxu0 0.0
    %61 = vmatpush1.msra.mxu0 0.0
    %62 = vmatprep.subr.mxu0 0.0
    %63 = vmatpush1.msra.mxu0 0.0
    %64 = vmatprep.subr.mxu0 0.0
    %65 = vmatpush1.msra.mxu0 0.0
    %66 = vmatprep.subr.mxu0 0.0
    %67 = vmatpush1.msra.mxu0 0.0
    %68 = vmatprep.subr.mxu0 0.0
    %69 = vmatpush1.msra.mxu0 0.0
    %70 = vmatprep.subr.mxu0 0.0
    %71 = vmatpush1.msra.mxu0 0.0
    %72 = vmatprep.subr.mxu0 0.0
    %73 = vmatpush1.msra.mxu0 0.0
    %74 = vmatprep.subr.mxu0 0.0
    %75 = vmatpush1.msra.mxu0 0.0
    %76 = vmatprep.subr.mxu0 0.0
    %77 = vmatpush1.msra.mxu0 0.0
    %78 = vmatprep.subr.mxu0 0.0
    %79 = vmatpush1.msra.mxu0 0.0
    %80 = vmatprep.subr.mxu0 0.0
    %81 = vmatpush1.msra.mxu0 0.0
    %82 = vmatprep.subr.mxu0 0.0
    %83 = vmatpush1.msra.mxu0 0.0
    %84 = vmatprep.subr.mxu0 0.0
    %85 = vmatpush1.msra.mxu0 0.0
    %86 = vmatprep.subr.mxu0 0.0
    %87 = vmatpush1.msra.mxu0 0.0
    %88 = vmatprep.subr.mxu0 0.0
    %89 = vmatpush1.msra.mxu0 0.0
    %90 = vmatprep.subr.mxu0 0.0
    %91 = vmatpush1.msra.mxu0 0.0
    %92 = vmatprep.subr.mxu0 0.0
    %93 = vmatpush1.msra.mxu0 0.0
    %94 = vmatprep.subr.mxu0 0.0
    %95 = vmatpush1.msra.mxu0 0.0
    %96 = vmatprep.subr.mxu0 0.0
    %97 = vmatpush1.msra.mxu0 0.0
    %98 = vmatprep.subr.mxu0 0.0
    %99 = vmatpush1.msra.mxu0 0.0
    %100 = vmatprep.subr.mxu0 0.0
    %101 = vmatpush1.msra.mxu0 0.0
    %102 = vmatprep.subr.mxu0 0.0
    %103 = vmatpush1.msra.mxu0 0.0
    %104 = vmatprep.subr.mxu0 0.0
    %105 = vmatpush1.msra.mxu0 0.0
    %106 = vmatprep.subr.mxu0 0.0
    %107 = vmatpush1.msra.mxu0 0.0
    %108 = vmatprep.subr.mxu0 0.0
    %109 = vmatpush1.msra.mxu0 0.0
    %110 = vmatprep.subr.mxu0 0.0
    %111 = vmatpush1.msra.mxu0 0.0
    %112 = vmatprep.subr.mxu0 0.0
    %113 = vmatpush1.msra.mxu0 0.0
    %114 = vmatprep.subr.mxu0 0.0
    %115 = vmatpush1.msra.mxu0 0.0
    %116 = vmatprep.subr.mxu0 0.0
    %117 = vmatpush1.msra.mxu0 0.0
    %118 = vmatprep.subr.mxu0 0.0
    %119 = vmatpush1.msra.mxu0 0.0
    %120 = vmatprep.mubr.f32.mxu0 0.0
    %121 = vmatmul.mubr.f32.gmra.mrb[0].mxu0 %v54
    %v122 = vpop.f32.mrb[0].mxu0
    %v123 = vadd.f32 0.0, %v122
    %v124 = vpop.f32.mrb[0].mxu0
    %125 = vdwg.mxu0
    %127 = vrot.lane.b32.xlu0 %v49, 112
    %v128 = vpop.permute.xlu0 %127
    %v129 = vsel %vm52, %v128, 0
    %131 = vmatprep.subr.mxu0 0.0
    %132 = vmatpush1.msra.mxu0 %v50
    %133 = vmatprep.subr.mxu0 0.0
    %134 = vmatpush1.msra.mxu0 %v51
    %135 = vmatprep.subr.mxu0 0.0
    %136 = vmatpush1.msra.mxu0 0.0
    %137 = vmatprep.subr.mxu0 0.0
    %138 = vmatpush1.msra.mxu0 0.0
    %139 = vmatprep.subr.mxu0 0.0
    %140 = vmatpush1.msra.mxu0 0.0
    %141 = vmatprep.subr.mxu0 0.0
    %142 = vmatpush1.msra.mxu0 0.0
    %143 = vmatprep.subr.mxu0 0.0
    %144 = vmatpush1.msra.mxu0 0.0
    %145 = vmatprep.subr.mxu0 0.0
    %146 = vmatpush1.msra.mxu0 0.0
    %147 = vmatprep.subr.mxu0 0.0
    %148 = vmatpush1.msra.mxu0 0.0
    %149 = vmatprep.subr.mxu0 0.0
    %150 = vmatpush1.msra.mxu0 0.0
    %151 = vmatprep.subr.mxu0 0.0
    %152 = vmatpush1.msra.mxu0 0.0
    %153 = vmatprep.subr.mxu0 0.0
    %154 = vmatpush1.msra.mxu0 0.0
    %155 = vmatprep.subr.mxu0 0.0
    %156 = vmatpush1.msra.mxu0 0.0
    %157 = vmatprep.subr.mxu0 0.0
    %158 = vmatpush1.msra.mxu0 0.0
    %159 = vmatprep.subr.mxu0 0.0
    %160 = vmatpush1.msra.mxu0 0.0
    %161 = vmatprep.subr.mxu0 0.0
    %162 = vmatpush1.msra.mxu0 0.0
    %163 = vmatprep.subr.mxu0 0.0
    %164 = vmatpush1.msra.mxu0 0.0
    %165 = vmatprep.subr.mxu0 0.0
    %166 = vmatpush1.msra.mxu0 0.0
    %167 = vmatprep.subr.mxu0 0.0
    %168 = vmatpush1.msra.mxu0 0.0
    %169 = vmatprep.subr.mxu0 0.0
    %170 = vmatpush1.msra.mxu0 0.0
    %171 = vmatprep.subr.mxu0 0.0
    %172 = vmatpush1.msra.mxu0 0.0
    %173 = vmatprep.subr.mxu0 0.0
    %174 = vmatpush1.msra.mxu0 0.0
    %175 = vmatprep.subr.mxu0 0.0
    %176 = vmatpush1.msra.mxu0 0.0
    %177 = vmatprep.subr.mxu0 0.0
    %178 = vmatpush1.msra.mxu0 0.0
    %179 = vmatprep.subr.mxu0 0.0
    %180 = vmatpush1.msra.mxu0 0.0
    %181 = vmatprep.subr.mxu0 0.0
    %182 = vmatpush1.msra.mxu0 0.0
    %183 = vmatprep.subr.mxu0 0.0
    %184 = vmatpush1.msra.mxu0 0.0
    %185 = vmatprep.subr.mxu0 0.0
    %186 = vmatpush1.msra.mxu0 0.0
    %187 = vmatprep.subr.mxu0 0.0
    %188 = vmatpush1.msra.mxu0 0.0
    %189 = vmatprep.subr.mxu0 0.0
    %190 = vmatpush1.msra.mxu0 0.0
    %191 = vmatprep.subr.mxu0 0.0
    %192 = vmatpush1.msra.mxu0 0.0
    %193 = vmatprep.subr.mxu0 0.0
    %194 = vmatpush1.msra.mxu0 0.0
    %195 = vmatprep.mubr.f32.mxu0 0.0
    %196 = vmatmul.mubr.f32.gmra.mrb[0].mxu0 %v129
    %v197 = vpop.f32.mrb[0].mxu0
    %v198 = vadd.f32 0.0, %v197
    %v199 = vpop.f32.mrb[0].mxu0
    %200 = vdwg.mxu0
    %vm201 = vcmask 64512
    %202 = vst.msk [vmem:[#allocation7] sm:$0xff] %vm201, %v123
    %204 = vrot.lane.b32.xlu0 %v123, 120
    %v205 = vpop.permute.xlu0 %204
    %s207 = scalar_lea.vmem [#allocation7], 8
    %208 = vst.msk [vmem:[%s207] sm:$0xff] %vm201, %v205
    %s209 = scalar_lea.vmem [#allocation7], 16
    %210 = vst.msk [vmem:[%s209] sm:$0xff] %vm201, %v198
    %212 = vrot.lane.b32.xlu0 %v198, 120
    %v213 = vpop.permute.xlu0 %212
    %s215 = scalar_lea.vmem [#allocation7], 24
    %216 = vst.msk [vmem:[%s215] sm:$0xff] %vm201, %v213
    // Predicated region
    $region18: #{tpu_custom_call.1} parent=1 // pred_check
      _
    $region19: #{tpu_custom_call.1} parent=1 // pred_check_branch
      %218 = sbr.rel (0) target = $region21
    $region20: #{tpu_custom_call.1} parent=1 // pred_region
      %s220 = ssub.s32 512, 512
      %221 = vsyncadd [#allocation4], %s220
      %s222 = sshll.u32 [#allocation7], 4
      %s223 = int_to_ptr.vmem [resolvable:$true] %s222
      %228 = dma.vmem_to_hbm [thread:$0]  %s223, 512, %s2, [#allocation4], 128, 128, 8
    $region21: #{tpu_custom_call.1} parent=1 // pred_fallthru
      _
    // Predicated region
    $region22: #{tpu_custom_call.1} parent=1 // pred_check
      _
    $region23: #{tpu_custom_call.1} parent=1 // pred_check_branch
      %230 = sbr.rel (0) target = $region25
    $region24: #{tpu_custom_call.1} parent=1 // pred_region
      %231 = dma.done [#allocation4], 512
    $region25: #{tpu_custom_call.1} parent=1 // pred_fallthru
      _
    %232 = vsyncpa [#allocation3], 1
    %233 = vsyncpa [#allocation6], 1
    %234 = vsyncpa [#allocation4], 1

// kernel: tpu_custom_call.1
$region0: #{tpu_custom_call.1}
  #allocation0 [shape = 'u32[]', space=smem, size = 0x4, offset = 0x4, fixed_abs, tag = 'smem constant byte address 0x4 - core index']
  #allocation1 [shape = 'u32[144,128]{1,0:T(1,128)}', space=vmem, size = 0x12000, scoped, tag = 'internal scratch']
  %s0 = inlined_call_operand.hbm [shape: f32[2,8,8,16], index: 0, kind: input, shape index: {}]
  %s1 = inlined_call_operand.hbm [shape: f32[4,8,8,8], index: 1, kind: output, shape index: {}]
  %s2 = sld [smem:[#allocation0]]
  $region41: #{tpu_custom_call.1} parent=0
    _
  %s4 = ssub.s32 1, %s2
  %s5 = scalar_select 0, %s4, %s2
  $region1: #{tpu_custom_call.1} parent=0
    #allocation2 [shape = 'u8[16384]{0}', space=vmem, size = 0x4000, scoped, tag = 'input window, operand 0']
    #allocation3 [shape = 's32[2]{0}', space=sflag, size = 0x8, scoped, tag = 'scoped memory for tpu_custom_call.1']
    #allocation4 [shape = 's32[2]{0}', space=sflag, size = 0x8, scoped, tag = 'scoped memory for tpu_custom_call.1']
    #allocation5 [shape = 'u8[32768]{0}', space=vmem, size = 0x8000, scoped, tag = 'output window, operand 0']
    %6 = vsyncpa [#allocation3], 0
    %s7 = scalar_lea.sflag [#allocation3], 1
    %8 = vsyncpa %s7, 0
    %9 = vsyncpa [#allocation4], 0
    %s10 = scalar_lea.sflag [#allocation4], 1
    %11 = vsyncpa %s10, 0
    loop: start=0, step=1, limit=10
    $region2: #{tpu_custom_call.1} parent=1 // loop_pre_header
      _
    $region3: #{tpu_custom_call.1} parent=1 // loop_header
      %s13 = sphi 0, %s17
      %p14 = scmp.ge.s32.totalorder %s13, 10
      %s20 = sphi 0, %s32
      %s21 = sphi 0, %s28
      %s22 = sphi 0, %s20
      %s23 = sphi 0, %s21
      %s24 = sphi 0, %s22
      %s25 = sphi 0, %s23
      %s37 = sphi 0, %s39
      %s40 = sphi 0, %s37
      %s41 = sphi 0, %s40
      %s57 = sphi 0, %s41
      %s65 = sphi 0, %s67
      %s68 = sphi 0, %s65
      %s69 = sphi 0, %s68
      %s85 = sphi 0, %s69
    $region4: #{tpu_custom_call.1} parent=1 // loop_header_branch
      %16 = sbr.rel (%p14) target = $region8
    $region5: #{tpu_custom_call.1} parent=1 // loop_body
      %s18 = ssub.s32 %s13, 1
      %s19 = ssub.s32 %s13, 2
      %s26 = sadd.s32 1, %s21
      %p27 = scmp.ge.s32.totalorder %s26, 1
      %s28 = scalar_select %p27, 0, %s26
      %s29 = sadd.s32 1, %s20
      %s30 = scalar_select %p27, %s29, %s20
      %p31 = scmp.ge.s32.totalorder %s30, 8
      %s32 = scalar_select %p31, 0, %s30
      %s33 = ssub.s32 %s20, %s32
      %s34 = ssub.s32 %s21, %s28
      %s35 = sor.u32 %s33, %s34
      %p36 = scmp.eq.s32.totalorder %s35, 0
      %s38 = sadd.s32 %s37, 1
      %s39 = scalar_select %p36, %s37, %s38
      %p42 = pneg %p36
      %p43 = scmp.eq.s32.totalorder %s13, 7
      %p44 = por %p42, %p43
      %p45 = scmp.ne.s32.totalorder %s37, %s40
      %p46 = scmp.eq.s32.totalorder %s13, 0
      %p47 = por %p45, %p46
      %p48 = scmp.ne.s32.totalorder %s37, %s40
      %p49 = scmp.eq.s32.totalorder %s18, 7
      %p50 = por %p48, %p49
      %p51 = scmp.ne.s32.totalorder %s40, %s41
      %p52 = scmp.eq.s32.totalorder %s18, 0
      %p53 = por %p51, %p52
      %p54 = scmp.ne.s32.totalorder %s40, %s41
      %p55 = scmp.eq.s32.totalorder %s19, 7
      %p56 = por %p54, %p55
      %p58 = scmp.ne.s32.totalorder %s41, %s57
      %p59 = scmp.eq.s32.totalorder %s19, 0
      %p60 = por %p58, %p59
      %s61 = ssub.s32 %s20, %s32
      %s62 = ssub.s32 %s21, %s28
      %s63 = sor.u32 %s61, %s62
      %p64 = scmp.eq.s32.totalorder %s63, 0
      %s66 = sadd.s32 %s65, 1
      %s67 = scalar_select %p64, %s65, %s66
      %p70 = pneg %p64
      %p71 = scmp.eq.s32.totalorder %s13, 7
      %p72 = por %p70, %p71
      %p73 = scmp.ne.s32.totalorder %s65, %s68
      %p74 = scmp.eq.s32.totalorder %s13, 0
      %p75 = por %p73, %p74
      %p76 = scmp.ne.s32.totalorder %s65, %s68
      %p77 = scmp.eq.s32.totalorder %s18, 7
      %p78 = por %p76, %p77
      %p79 = scmp.ne.s32.totalorder %s68, %s69
      %p80 = scmp.eq.s32.totalorder %s18, 0
      %p81 = por %p79, %p80
      %p82 = scmp.ne.s32.totalorder %s68, %s69
      %p83 = scmp.eq.s32.totalorder %s19, 7
      %p84 = por %p82, %p83
      %p86 = scmp.ne.s32.totalorder %s69, %s85
      %p87 = scmp.eq.s32.totalorder %s19, 0
      %p88 = por %p86, %p87
      %p89 = scmp.le.s32.totalorder 1, %s13
      %p90 = scmp.lt.s32.totalorder %s13, 9
      %p91 = pnand %p89, %p90
      %p92 = pneg %p91
      // Predicated region
      $region9: #{tpu_custom_call.1} parent=5 // pred_check
        _
      $region10: #{tpu_custom_call.1} parent=5 // pred_check_branch
        %94 = sbr.rel (%p91) target = $region12
      $region11: #{tpu_custom_call.1} parent=5 // pred_region
        %s95 = ssub.s32 %s13, 1
      $region12: #{tpu_custom_call.1} parent=5 // pred_fallthru
        _
      %p96 = scmp.lt.s32.totalorder %s13, 8
      // Predicated region
      $region13: #{tpu_custom_call.1} parent=5 // pred_check
        %p97 = pneg %p96
      $region14: #{tpu_custom_call.1} parent=5 // pred_check_branch
        %99 = sbr.rel (%p97) target = $region16
      $region15: #{tpu_custom_call.1} parent=5 // pred_region
        // Predicated region
        $region17: #{tpu_custom_call.1} parent=15 // pred_check
          %p100 = pneg %p47
        $region18: #{tpu_custom_call.1} parent=15 // pred_check_branch
          %102 = sbr.rel (%p100) target = $region20
        $region19: #{tpu_custom_call.1} parent=15 // pred_region
          %s103 = sand.u32 %s37, 1
          %s104 = scalar_lea.sflag [#allocation3], %s103
          %s105 = sand.u32 %s37, 1
          %s106 = smul.addr %s105, 16
          %s107 = scalar_lea.vmem [#allocation2], %s106
          %s109 = ssub.s32 256, 256
          %110 = vsyncadd %s104, %s109
          %s111 = sadd.s32 %s21, %s20
          %s112 = smul.addr %s111, 128
          %s113 = scalar_lea.hbm %s0, %s112
          %s114 = sshll.u32 %s107, 4
          %s115 = int_to_ptr.vmem [resolvable:$true] %s114
          %120 = dma.hbm_to_vmem [thread:$0]  %s113, 256, %s115, %s104, 1024, 128, 8
        $region20: #{tpu_custom_call.1} parent=15 // pred_fallthru
          _
      $region16: #{tpu_custom_call.1} parent=5 // pred_fallthru
        _
      %p121 = scmp.le.s32.totalorder 1, %s13
      %p122 = scmp.lt.s32.totalorder %s13, 9
      %p123 = pnand %p121, %p122
      %p124 = pneg %p123
      // Predicated region
      $region21: #{tpu_custom_call.1} parent=5 // pred_check
        _
      $region22: #{tpu_custom_call.1} parent=5 // pred_check_branch
        %126 = sbr.rel (%p123) target = $region24
      $region23: #{tpu_custom_call.1} parent=5 // pred_region
        %s127 = ssub.s32 %s13, 1
        %s128 = sand.u32 %s40, 1
        %s129 = scalar_lea.sflag [#allocation3], %s128
        %s130 = sand.u32 %s40, 1
        %s131 = smul.addr %s130, 16
        %s132 = scalar_lea.vmem [#allocation2], %s131
        // Predicated region
        $region25: #{tpu_custom_call.1} parent=23 // pred_check
          %p133 = pneg %p53
        $region26: #{tpu_custom_call.1} parent=23 // pred_check_branch
          %135 = sbr.rel (%p133) target = $region28
        $region27: #{tpu_custom_call.1} parent=23 // pred_region
          %136 = dma.done %s129, 256
        $region28: #{tpu_custom_call.1} parent=23 // pred_fallthru
          _
        %s137 = sand.u32 %s40, 1
        %s138 = scalar_lea.sflag [#allocation3], %s137
        %s139 = sand.u32 %s40, 1
        %s140 = smul.addr %s139, 16
        %s141 = scalar_lea.vmem [#allocation2], %s140
        %p142 = pneg %p53
        %p143 = pneg %p50
        %p144 = pneg %p81
        %p145 = pneg %p78
        %s146 = sand.u32 %s68, 1
        %s147 = scalar_lea.sflag [#allocation4], %s146
        %s148 = sand.u32 %s68, 1
        %s149 = smul.addr %s148, 32
        %s150 = scalar_lea.vmem [#allocation5], %s149
        %v151 = vld [vmem:[%s132] sm:$0xff]
        %v152 = vmul.f32 %v151, 0.5
        %s153 = scalar_lea.vmem %s132, 8 [#allocation2]
        %v154 = vld [vmem:[%s153] sm:$0xff]
        %v155 = vmul.f32 %v154, 0.5
        %157 = vrot.lane.b32.xlu0 %v152, 120
        %v158 = vpop.permute.xlu0 %157
        %v160 = vadd.f32 %v152, %v158
        %162 = vrot.lane.b32.xlu0 %v155, 120
        %v163 = vpop.permute.xlu0 %162
        %v165 = vadd.f32 %v155, %v163
        %166 = vrot.lane.b32.xlu0 %v152, 8
        %v167 = vpop.permute.xlu0 %166
        %v169 = vsub.f32 %v152, %v167
        %170 = vrot.lane.b32.xlu0 %v155, 8
        %v171 = vpop.permute.xlu0 %170
        %v173 = vsub.f32 %v155, %v171
        %v174 = vadd.f32 %v160, %v165
        %vm175 = vcmask 64512
        %176 = vst.msk [vmem:[%s150] sm:$0xff] %vm175, %v174
        %v177 = vsub.f32 %v165, %v160
        %s178 = scalar_lea.vmem %s150, 8 [#allocation5]
        %179 = vst.msk [vmem:[%s178] sm:$0xff] %vm175, %v177
        %v180 = vadd.f32 %v169, %v173
        %182 = vrot.lane.b32.xlu0 %v180, 120
        %v183 = vpop.permute.xlu0 %182
        %s185 = scalar_lea.vmem %s150, 16 [#allocation5]
        %186 = vst.msk [vmem:[%s185] sm:$0xff] %vm175, %v183
        %v187 = vsub.f32 %v173, %v169
        %189 = vrot.lane.b32.xlu0 %v187, 120
        %v190 = vpop.permute.xlu0 %189
        %s192 = scalar_lea.vmem %s150, 24 [#allocation5]
        %193 = vst.msk [vmem:[%s192] sm:$0xff] %vm175, %v190
        %s194 = sand.u32 %s68, 1
        %s195 = scalar_lea.sflag [#allocation4], %s194
        %s196 = sand.u32 %s68, 1
        %s197 = smul.addr %s196, 32
        %s198 = scalar_lea.vmem [#allocation5], %s197
        // Predicated region
        $region29: #{tpu_custom_call.1} parent=23 // pred_check
          %p199 = pneg %p78
        $region30: #{tpu_custom_call.1} parent=23 // pred_check_branch
          %201 = sbr.rel (%p199) target = $region32
        $region31: #{tpu_custom_call.1} parent=23 // pred_region
          %s203 = ssub.s32 512, 512
          %204 = vsyncadd %s195, %s203
          %s205 = sadd.s32 %s23, %s22
          %s206 = smul.addr %s205, 128
          %s207 = scalar_lea.hbm %s1, %s206
          %s208 = sshll.u32 %s198, 4
          %s209 = int_to_ptr.vmem [resolvable:$true] %s208
          %214 = dma.vmem_to_hbm [thread:$0]  %s209, 512, %s207, %s195, 128, 1024, 8
        $region32: #{tpu_custom_call.1} parent=23 // pred_fallthru
          _
      $region24: #{tpu_custom_call.1} parent=5 // pred_fallthru
        _
      %p215 = scmp.le.s32.totalorder 2, %s13
      // Predicated region
      $region33: #{tpu_custom_call.1} parent=5 // pred_check
        %p216 = pneg %p215
      $region34: #{tpu_custom_call.1} parent=5 // pred_check_branch
        %218 = sbr.rel (%p216) target = $region36
      $region35: #{tpu_custom_call.1} parent=5 // pred_region
        %s219 = ssub.s32 %s13, 2
        // Predicated region
        $region37: #{tpu_custom_call.1} parent=35 // pred_check
          %p220 = pneg %p84
        $region38: #{tpu_custom_call.1} parent=35 // pred_check_branch
          %222 = sbr.rel (%p220) target = $region40
        $region39: #{tpu_custom_call.1} parent=35 // pred_region
          %s223 = sand.u32 %s69, 1
          %s224 = scalar_lea.sflag [#allocation4], %s223
          %s225 = sand.u32 %s69, 1
          %s226 = smul.addr %s225, 32
          %s227 = scalar_lea.vmem [#allocation5], %s226
          %228 = dma.done %s224, 512
        $region40: #{tpu_custom_call.1} parent=35 // pred_fallthru
          _
      $region36: #{tpu_custom_call.1} parent=5 // pred_fallthru
        _
    $region6: #{tpu_custom_call.1} parent=1 // loop_footer
      %s17 = sadd.s32 1, %s13
    $region7: #{tpu_custom_call.1} parent=1 // loop_footer_branch
      %12 = sbr.rel target = $region3
    $region8: #{tpu_custom_call.1} parent=1 // loop_exit
      _
    %229 = vsyncpa [#allocation3], 1
    %s230 = scalar_lea.sflag [#allocation3], 1
    %231 = vsyncpa %s230, 1
    %232 = vsyncpa [#allocation4], 1
    %s233 = scalar_lea.sflag [#allocation4], 1
    %234 = vsyncpa %s233, 1

</llo_original>
